<compile_context>
chip_gen: v6e
topology: v6e:2x2x1
jax: 0.10.0
libtpu: 0.0.40
codegen_flags: <defaults>
</compile_context>

<pallas_src>
import functools

import jax
import jax.numpy as jnp
from jax.experimental import pallas as pl
from jax.experimental.pallas import tpu as pltpu


NEG_SLOPE = 0.01                 # PyTorch default for nn.LeakyReLU / F.leaky_relu
_BF16_WEIGHT_THRESHOLD = 65536   # weights with >= this many elements travel as bf16


def _round_up(x, m):
    return ((x + m - 1) // m) * m


def _round_down_min(x, m):
    return max(m, (x // m) * m)


def _device_kind():
    try:
        return jax.devices()[0].device_kind.lower()
    except Exception:
        return ""


def _vmem_capacity_bytes():
    """Physical VMEM per TensorCore (128 MiB v5e/v6e, 64 MiB v7x); conservative fallback."""
    try:
        info = pltpu.get_tpu_info()
        for name in ("vmem_capacity_bytes", "vmem_bytes", "vmem_size_bytes"):
            cap = getattr(info, name, None)
            if cap:
                return int(cap)
    except Exception:
        pass
    return 64 * 1024 * 1024   # v7x-sized conservative default


# --------------------------------------------------------------------------------------
# Kernel bodies
# --------------------------------------------------------------------------------------

def _encoder_kernel_resident(n_layers, out_dims, *refs):
    """All weights resident in VMEM, single (batch-parallel) grid axis.

    refs: x_ref, w_refs[0..n_layers-1], b_ref (packed biases), out_ref
    """
    x_ref = refs[0]
    w_refs = refs[1:1 + n_layers]
    b_ref = refs[1 + n_layers]
    out_ref = refs[2 + n_layers]

    biases = b_ref[...]
    h = x_ref[...]
    for i in range(n_layers):
        w = w_refs[i][...]
        h = jnp.dot(h.astype(w.dtype), w, preferred_element_type=jnp.float32)
        h = h + biases[i, :out_dims[i]]
        if i < n_layers - 1:            # last "layer" is the fused (mu|logsigma) head: no act
            h = jnp.where(h > 0, h, NEG_SLOPE * h)
    out_ref[...] = h.astype(out_ref.dtype)


def _encoder_kernel_ktiled(n_layers, out_dims, *refs):
    """Layer 0 K-tiled with an f32 accumulator; remaining (small) layers run in finalize.

    refs: x_ref (bm,bk tile), w_refs[0] (bk,N0 tile), w_refs[1:], b_ref, out_ref, acc_ref
    """
    x_ref = refs[0]
    w_refs = refs[1:1 + n_layers]
    b_ref = refs[1 + n_layers]
    out_ref = refs[2 + n_layers]
    acc_ref = refs[3 + n_layers]

    k = pl.program_id(1)

    @pl.when(k == 0)
    def _():
        # Fold the layer-0 bias into the accumulator init (one fewer VPU add in finalize).
        acc_ref[...] = jnp.broadcast_to(b_ref[0:1, :out_dims[0]], acc_ref.shape)

    # x was pre-cast in the wrapper to match W0's dtype -> no per-step cast here.
    acc_ref[...] += jnp.dot(x_ref[...], w_refs[0][...],
                            preferred_element_type=jnp.float32)

    @pl.when(k == pl.num_programs(1) - 1)
    def _():
        biases = b_ref[...]
        h = acc_ref[...]
        if n_layers > 1:                # layer 0 is a hidden layer -> LeakyReLU
            h = jnp.where(h > 0, h, NEG_SLOPE * h)
        for i in range(1, n_layers):
            w = w_refs[i][...]
            h = jnp.dot(h.astype(w.dtype), w, preferred_element_type=jnp.float32)
            h = h + biases[i, :out_dims[i]]
            if i < n_layers - 1:
                h = jnp.where(h > 0, h, NEG_SLOPE * h)
        out_ref[...] = h.astype(out_ref.dtype)


# --------------------------------------------------------------------------------------
# Wrapper
# --------------------------------------------------------------------------------------

def dense_encoder(x, params, *, force_ktiled=False, bk_cap=8192):
    """Run the fused DenseEncoder kernel.

    x      : (B, C, H, W) or (B, F) array
    params : dict with keys
               'hidden': list of (W, b) with W: (f_in, f_out), b: (1, f_out)
               'mu'    : (W, b), 'logsigma': (W, b)
    returns (mu, logsigma), each (B, latent) float32
    """
    if x.ndim > 2:
        x = x.reshape(x.shape[0], -1)            # torch.flatten(x, start_dim=1)
    B, F = x.shape
    latent = params['mu'][0].shape[1]

    # ---- fuse the two MultiDense heads into a single (hidden, 2*latent) layer --------
    w_head = jnp.concatenate([params['mu'][0], params['logsigma'][0]], axis=1)
    b_head = jnp.concatenate([params['mu'][1], params['logsigma'][1]], axis=1)
    layers = list(params['hidden']) + [(w_head, b_head)]
    n_layers = len(layers)

    # ---- padded layer dims: every output dim a multiple of 128 (lane-dense) ----------
    f_pad_full = _round_up(F, 128)
    in_dims = [f_pad_full]
    out_dims = []
    for w, _ in layers:
        out_dims.append(_round_up(w.shape[1], 128))
        in_dims.append(out_dims[-1])
    n_max = max(out_dims)

    # ---- dtypes: large weights (and x, when W0 is large) travel as bf16 --------------
    # TODO(synk): on v7x the large weights could travel as fp8 (e4m3) for another 2x HBM saving.
    w_dtypes = [jnp.bfloat16 if in_dims[i] * out_dims[i] >= _BF16_WEIGHT_THRESHOLD
                else jnp.float32 for i in range(n_layers)]
    x_dtype = w_dtypes[0]
    x_item = jnp.dtype(x_dtype).itemsize
    w0_item = jnp.dtype(w_dtypes[0]).itemsize

    # ---- hardware-aware tiling plan ---------------------------------------------------
    kind = _device_kind()
    cap = _vmem_capacity_bytes()
    vmem_limit = int(cap * 0.80)       # scoped-VMEM limit handed to the compiler
    plan_budget = int(cap * 0.70)      # what tiles are planned against (headroom for compiler scratch)

    bm_cap = 128 if "v5" in kind else 256            # 256-wide MXU on v6e/v7x, 128 on v5e
    b_unit = _round_up(max(B, 1), 8)
    bm = min(bm_cap, b_unit)
    num_tc = 2 if "v7" in kind else 1                # v7x: 2 TensorCores per chip
    if num_tc > 1 and b_unit // bm < num_tc and bm > 8:
        # give the "parallel" batch axis >=2 iterations so megacore can shard it
        bm = max(8, _round_up(pl.cdiv(b_unit, num_tc), 8))
    b_pad = _round_up(max(B, 1), bm)

    def run(single_buffer):
        buf_small = 1 if single_buffer else 2

        # Blocks resident regardless of mode (constant index_map).
        # TODO(synk): downstream (non-first) weights above a few MiB should get their own
        # K/N tiling instead of being kept resident (matters most on v7x's 64 MiB VMEM).
        small_w_bytes = sum(in_dims[i] * out_dims[i] * jnp.dtype(w_dtypes[i]).itemsize
                            for i in range(1, n_layers)) * buf_small
        bias_bytes = n_layers * n_max * 4 * buf_small
        out_bytes = 2 * bm * out_dims[-1] * 4

        # ---- Mode A: layer-0 weight fully resident (no reduction axis at all) --------
        resident_total = (2 * bm * f_pad_full * x_item
                          + f_pad_full * out_dims[0] * w0_item * buf_small
                          + small_w_bytes + bias_bytes + out_bytes)
        use_resident = (not force_ktiled) and resident_total <= plan_budget

        if use_resident:
            f_pad, bk, nk = f_pad_full, f_pad_full, 1
        else:
            # ---- Mode B: K-tiled layer 0; largest bk whose buffers fit the budget ----
            fixed = bm * out_dims[0] * 4 + small_w_bytes + bias_bytes + out_bytes
            denom = 2 * bm * x_item + 2 * out_dims[0] * w0_item
            bk = max(128, min(bk_cap, f_pad_full,
                              _round_down_min((plan_budget - fixed) // max(denom, 1), 128)))
            f_pad = _round_up(F, bk)
            nk = f_pad // bk

        # ---- pad weights / pack biases / pad + cast x --------------------------------
        padded_ws = []
        bias_pack = jnp.zeros((n_layers, n_max), jnp.float32)
        for i, (w, b) in enumerate(layers):
            k_in = f_pad if i == 0 else in_dims[i]
            wp = jnp.zeros((k_in, out_dims[i]), jnp.float32)
            wp = wp.at[:w.shape[0], :w.shape[1]].set(w.astype(jnp.float32))
            padded_ws.append(wp.astype(w_dtypes[i]))
            bias_pack = bias_pack.at[i, :b.shape[-1]].set(
                b.reshape(-1).astype(jnp.float32))

        xp = jnp.zeros((b_pad, f_pad), x_dtype).at[:B, :F].set(x.astype(x_dtype))

        # ---- block specs --------------------------------------------------------------
        def const_spec(shape, index_map):
            # constant-index blocks never change across grid steps -> single-buffer them
            if single_buffer:
                return pl.BlockSpec(shape, index_map, pipeline_mode=pl.Buffered(1))
            return pl.BlockSpec(shape, index_map)

        if use_resident:
            grid = (b_pad // bm,)
            in_specs = [pl.BlockSpec((bm, f_pad), lambda i: (i, 0)),
                        const_spec((f_pad, out_dims[0]), lambda i: (0, 0))]
            for w in padded_ws[1:]:
                in_specs.append(const_spec(w.shape, lambda i: (0, 0)))
            in_specs.append(const_spec((n_layers, n_max), lambda i: (0, 0)))
            out_spec = pl.BlockSpec((bm, out_dims[-1]), lambda i: (i, 0))
            scratch = []
            kernel = functools.partial(_encoder_kernel_resident, n_layers, tuple(out_dims))
            dim_sem = ("parallel",)
            w0_streams = 1
        else:
            grid = (b_pad // bm, nk)
            in_specs = [pl.BlockSpec((bm, bk), lambda i, k: (i, k)),
                        pl.BlockSpec((bk, out_dims[0]), lambda i, k: (k, 0))]
            for w in padded_ws[1:]:
                in_specs.append(const_spec(w.shape, lambda i, k: (0, 0)))
            in_specs.append(const_spec((n_layers, n_max), lambda i, k: (0, 0)))
            out_spec = pl.BlockSpec((bm, out_dims[-1]), lambda i, k: (i, 0))
            scratch = [pltpu.VMEM((bm, out_dims[0]), jnp.float32)]
            kernel = functools.partial(_encoder_kernel_ktiled, n_layers, tuple(out_dims))
            dim_sem = ("parallel", "arbitrary")
            w0_streams = b_pad // bm          # W0 is re-streamed once per batch tile

        flops = 2 * b_pad * sum((f_pad if i == 0 else in_dims[i]) * out_dims[i]
                                for i in range(n_layers))
        bytes_accessed = (xp.size * xp.dtype.itemsize
                          + padded_ws[0].size * padded_ws[0].dtype.itemsize * w0_streams
                          + sum(w.size * w.dtype.itemsize for w in padded_ws[1:])
                          + bias_pack.size * 4
                          + b_pad * out_dims[-1] * 4)

        return pl.pallas_call(
            kernel,
            out_shape=jax.ShapeDtypeStruct((b_pad, out_dims[-1]), jnp.float32),
            grid_spec=pltpu.PrefetchScalarGridSpec(
                num_scalar_prefetch=0,
                grid=grid,
                in_specs=in_specs,
                out_specs=out_spec,
                scratch_shapes=scratch),
            compiler_params=pltpu.CompilerParams(
                dimension_semantics=dim_sem,
                vmem_limit_bytes=vmem_limit),
            cost_estimate=pl.CostEstimate(flops=flops, transcendentals=0,
                                          bytes_accessed=bytes_accessed),
        )(xp, *padded_ws, bias_pack)

    single = hasattr(pl, "Buffered")
    try:
        out = run(single_buffer=single)
    except Exception:
        if not single:
            raise
        out = run(single_buffer=False)   # fall back to default double-buffering

    mu = out[:B, :latent]
    logsigma = out[:B, latent:2 * latent]
    return mu, logsigma


# --------------------------------------------------------------------------------------
# Params / reference
# --------------------------------------------------------------------------------------

def init_params(key, num_features):
    """Deterministic PyTorch-Linear-style init: U(-1/sqrt(fan_in), 1/sqrt(fan_in))."""
    params = {'hidden': []}
    keys = jax.random.split(key, 2 * len(num_features))
    ki = 0
    # DenseBlock over num_features[:-1] (only exists if len(num_features) > 2)
    for f_in, f_out in zip(num_features[:-2], num_features[1:-1]):
        bound = 1.0 / jnp.sqrt(f_in)
        w = jax.random.uniform(keys[ki], (f_in, f_out), jnp.float32, -bound, bound); ki += 1
        b = jax.random.uniform(keys[ki], (1, f_out), jnp.float32, -bound, bound); ki += 1
        params['hidden'].append((w, b))
    # MultiDense heads: num_features[-2] -> num_features[-1], two blocks (mu, logsigma)
    f_in, f_out = num_features[-2], num_features[-1]
    bound = 1.0 / jnp.sqrt(f_in)
    for name in ('mu', 'logsigma'):
        w = jax.random.uniform(keys[ki], (f_in, f_out), jnp.float32, -bound, bound); ki += 1
        b = jax.random.uniform(keys[ki], (1, f_out), jnp.float32, -bound, bound); ki += 1
        params[name] = (w, b)
    return params


def reference(x, params):
    """Pure-JAX f32 reference of the same forward pass."""
    if x.ndim > 2:
        x = x.reshape(x.shape[0], -1)
    h = x
    for w, b in params['hidden']:
        h = h @ w + b
        h = jnp.where(h > 0, h, NEG_SLOPE * h)
    mu = h @ params['mu'][0] + params['mu'][1]
    ls = h @ params['logsigma'][0] + params['logsigma'][1]
    return mu, ls


if __name__ == "__main__":
    key = jax.random.PRNGKey(0)
    k_x, k_p, k_x2, k_p2 = jax.random.split(key, 4)

    # ---- test 1: toy NCHW input -> resident-W0 fast path (no reduction axis) ---------
    x = jax.random.normal(k_x, (2, 4, 16, 16), jnp.float32)     # flattened F = 1024
    num_features = [1024, 32, 16]          # hidden 1024->32 + LeakyReLU, heads 32->16
    params = init_params(k_p, num_features)

    mu, logsigma = dense_encoder(x, params)
    jax.block_until_ready((mu, logsigma))

    mu_ref, ls_ref = reference(x, params)
    assert mu.shape == (2, 16) and logsigma.shape == (2, 16)
    # layer-0 weight (and x) travel as bf16 with f32 accumulation -> bf16-level tolerance
    assert jnp.allclose(mu, mu_ref, atol=2e-2, rtol=2e-2), \
        float(jnp.max(jnp.abs(mu - mu_ref)))
    assert jnp.allclose(logsigma, ls_ref, atol=2e-2, rtol=2e-2), \
        float(jnp.max(jnp.abs(logsigma - ls_ref)))

    # ---- test 2: exercise the K-tiled accumulator path (bf16 W0, nk > 1) -------------
    x2 = jax.random.normal(k_x2, (16, 4096), jnp.float32)
    num_features2 = [4096, 256, 64, 32]    # two hidden layers, heads 64->32
    params2 = init_params(k_p2, num_features2)

    mu2, ls2 = dense_encoder(x2, params2, force_ktiled=True, bk_cap=512)
    jax.block_until_ready((mu2, ls2))

    mu2_ref, ls2_ref = reference(x2, params2)
    assert mu2.shape == (16, 32) and ls2.shape == (16, 32)
    assert jnp.allclose(mu2, mu2_ref, atol=2e-2, rtol=2e-2), \
        float(jnp.max(jnp.abs(mu2 - mu2_ref)))
    assert jnp.allclose(ls2, ls2_ref, atol=2e-2, rtol=2e-2), \
        float(jnp.max(jnp.abs(ls2 - ls2_ref)))

    print("KERNEL_OK")
</pallas_src>

<mosaic_0001>
module attributes {stable_mosaic.version = 11 : i64} {
  func.func @_encoder_kernel_resident(%arg0: i32, %arg1: memref<8x1024xbf16, #tpu.memory_space<vmem>>, %arg2: memref<1024x128xbf16, #tpu.memory_space<vmem>>, %arg3: memref<128x128xf32, #tpu.memory_space<vmem>>, %arg4: memref<2x128xf32, #tpu.memory_space<vmem>>, %arg5: memref<8x128xf32, #tpu.memory_space<vmem>>) attributes {dimension_semantics = [#tpu.dimension_semantics<parallel>], iteration_bounds = array<i64: 1>, scalar_prefetch = 0 : i64, scratch_operands = 0 : i64, tpu.core_type = #tpu.core_type<tc>, window_params = [{transform_indices = @transform_0, window_bounds = array<i64: 8, 1024>}, {pipeline_mode = #tpu.pipeline_mode<synchronous>, transform_indices = @transform_1, window_bounds = array<i64: 1024, 128>}, {pipeline_mode = #tpu.pipeline_mode<synchronous>, transform_indices = @transform_2, window_bounds = array<i64: 128, 128>}, {pipeline_mode = #tpu.pipeline_mode<synchronous>, transform_indices = @transform_3, window_bounds = array<i64: 2, 128>}, {transform_indices = @transform_4, window_bounds = array<i64: 8, 128>}]} {
    %c0 = arith.constant 0 : index
    %c0_0 = arith.constant 0 : index
    %0 = vector.load %arg4[%c0, %c0_0] : memref<2x128xf32, #tpu.memory_space<vmem>>, vector<2x128xf32>
    %c0_1 = arith.constant 0 : index
    %c0_2 = arith.constant 0 : index
    %1 = vector.load %arg1[%c0_1, %c0_2] : memref<8x1024xbf16, #tpu.memory_space<vmem>>, vector<8x1024xbf16>
    %c0_3 = arith.constant 0 : index
    %c0_4 = arith.constant 0 : index
    %2 = vector.load %arg2[%c0_3, %c0_4] : memref<1024x128xbf16, #tpu.memory_space<vmem>>, vector<1024x128xbf16>
    %cst = arith.constant dense<0.000000e+00> : vector<8x128xf32>
    %3 = tpu.matmul %1, %2, %cst {dimension_numbers = #tpu.dot_dimension_numbers<[1], [0], [0], [1], [0, 0, 1, 1], [], []>} : vector<8x1024xbf16>, vector<1024x128xbf16>, vector<8x128xf32> -> vector<8x128xf32>
    %4 = vector.extract_strided_slice %0 {offsets = [0, 0], sizes = [1, 128], strides = [1, 1]} : vector<2x128xf32> to vector<1x128xf32>
    %5 = vector.shape_cast %4 : vector<1x128xf32> to vector<128xf32>
    %6 = vector.shape_cast %5 : vector<128xf32> to vector<1x128xf32>
    %7 = vector.broadcast %6 : vector<1x128xf32> to vector<8x128xf32>
    %8 = arith.addf %3, %7 : vector<8x128xf32>
    %cst_5 = arith.constant 0.000000e+00 : f32
    %9 = vector.broadcast %cst_5 : f32 to vector<8x128xf32>
    %10 = arith.cmpf ogt, %8, %9 : vector<8x128xf32>
    %cst_6 = arith.constant 0.00999999977 : f32
    %11 = vector.broadcast %cst_6 : f32 to vector<8x128xf32>
    %12 = arith.mulf %11, %8 : vector<8x128xf32>
    %13 = arith.select %10, %8, %12 : vector<8x128xi1>, vector<8x128xf32>
    %c0_7 = arith.constant 0 : index
    %c0_8 = arith.constant 0 : index
    %14 = vector.load %arg3[%c0_7, %c0_8] : memref<128x128xf32, #tpu.memory_space<vmem>>, vector<128x128xf32>
    %cst_9 = arith.constant dense<0.000000e+00> : vector<8x128xf32>
    %15 = tpu.matmul %13, %14, %cst_9 {dimension_numbers = #tpu.dot_dimension_numbers<[1], [0], [0], [1], [0, 0, 1, 1], [], []>} : vector<8x128xf32>, vector<128x128xf32>, vector<8x128xf32> -> vector<8x128xf32>
    %16 = vector.extract_strided_slice %0 {offsets = [1, 0], sizes = [1, 128], strides = [1, 1]} : vector<2x128xf32> to vector<1x128xf32>
    %17 = vector.shape_cast %16 : vector<1x128xf32> to vector<128xf32>
    %18 = vector.shape_cast %17 : vector<128xf32> to vector<1x128xf32>
    %19 = vector.broadcast %18 : vector<1x128xf32> to vector<8x128xf32>
    %20 = arith.addf %15, %19 : vector<8x128xf32>
    %c0_10 = arith.constant 0 : index
    %c0_11 = arith.constant 0 : index
    %21 = vector.load %arg5[%c0_10, %c0_11] : memref<8x128xf32, #tpu.memory_space<vmem>>, vector<8x128xf32>
    tpu.vector_store %arg5[%c0_10, %c0_11], %20 {strides = array<i32>} : memref<8x128xf32, #tpu.memory_space<vmem>>, vector<8x128xf32>,
    return
  }
  func.func @transform_0(%arg0: i32) -> (i32, i32) {
    %c0_i32 = arith.constant 0 : i32
    %c0_i32_0 = arith.constant 0 : i32
    return %arg0, %c0_i32 : i32, i32
  }
  func.func @transform_1(%arg0: i32) -> (i32, i32) {
    %c0_i32 = arith.constant 0 : i32
    %c0_i32_0 = arith.constant 0 : i32
    %c0_i32_1 = arith.constant 0 : i32
    return %c0_i32, %c0_i32_0 : i32, i32
  }
  func.func @transform_2(%arg0: i32) -> (i32, i32) {
    %c0_i32 = arith.constant 0 : i32
    %c0_i32_0 = arith.constant 0 : i32
    %c0_i32_1 = arith.constant 0 : i32
    return %c0_i32, %c0_i32_0 : i32, i32
  }
  func.func @transform_3(%arg0: i32) -> (i32, i32) {
    %c0_i32 = arith.constant 0 : i32
    %c0_i32_0 = arith.constant 0 : i32
    %c0_i32_1 = arith.constant 0 : i32
    return %c0_i32, %c0_i32_0 : i32, i32
  }
  func.func @transform_4(%arg0: i32) -> (i32, i32) {
    %c0_i32 = arith.constant 0 : i32
    %c0_i32_0 = arith.constant 0 : i32
    return %arg0, %c0_i32 : i32, i32
  }
}

module attributes {stable_mosaic.version = 11 : i64} {
  func.func @_encoder_kernel_resident(%arg0: i32, %arg1: memref<8x1024xbf16, #tpu.memory_space<vmem>>, %arg2: memref<1024x128xbf16, #tpu.memory_space<vmem>>, %arg3: memref<128x128xf32, #tpu.memory_space<vmem>>, %arg4: memref<2x128xf32, #tpu.memory_space<vmem>>, %arg5: memref<8x128xf32, #tpu.memory_space<vmem>>) attributes {dimension_semantics = [#tpu.dimension_semantics<parallel>], iteration_bounds = array<i64: 1>, scalar_prefetch = 0 : i64, scratch_operands = 0 : i64, tpu.core_type = #tpu.core_type<tc>, window_params = [{transform_indices = @transform_0, window_bounds = array<i64: 8, 1024>}, {pipeline_mode = #tpu.pipeline_mode<synchronous>, transform_indices = @transform_1, window_bounds = array<i64: 1024, 128>}, {pipeline_mode = #tpu.pipeline_mode<synchronous>, transform_indices = @transform_2, window_bounds = array<i64: 128, 128>}, {pipeline_mode = #tpu.pipeline_mode<synchronous>, transform_indices = @transform_3, window_bounds = array<i64: 2, 128>}, {transform_indices = @transform_4, window_bounds = array<i64: 8, 128>}]} {
    %c0 = arith.constant 0 : index
    %c0_0 = arith.constant 0 : index
    %0 = vector.load %arg4[%c0, %c0_0] : memref<2x128xf32, #tpu.memory_space<vmem>>, vector<2x128xf32>
    %c0_1 = arith.constant 0 : index
    %c0_2 = arith.constant 0 : index
    %1 = vector.load %arg1[%c0_1, %c0_2] : memref<8x1024xbf16, #tpu.memory_space<vmem>>, vector<8x1024xbf16>
    %c0_3 = arith.constant 0 : index
    %c0_4 = arith.constant 0 : index
    %2 = vector.load %arg2[%c0_3, %c0_4] : memref<1024x128xbf16, #tpu.memory_space<vmem>>, vector<1024x128xbf16>
    %cst = arith.constant dense<0.000000e+00> : vector<8x128xf32>
    %3 = tpu.matmul %1, %2, %cst {dimension_numbers = #tpu.dot_dimension_numbers<[1], [0], [0], [1], [0, 0, 1, 1], [], []>} : vector<8x1024xbf16>, vector<1024x128xbf16>, vector<8x128xf32> -> vector<8x128xf32>
    %4 = vector.extract_strided_slice %0 {offsets = [0, 0], sizes = [1, 128], strides = [1, 1]} : vector<2x128xf32> to vector<1x128xf32>
    %5 = vector.shape_cast %4 : vector<1x128xf32> to vector<128xf32>
    %6 = vector.shape_cast %5 : vector<128xf32> to vector<1x128xf32>
    %7 = vector.broadcast %6 : vector<1x128xf32> to vector<8x128xf32>
    %8 = arith.addf %3, %7 : vector<8x128xf32>
    %cst_5 = arith.constant 0.000000e+00 : f32
    %9 = vector.broadcast %cst_5 : f32 to vector<8x128xf32>
    %10 = arith.cmpf ogt, %8, %9 : vector<8x128xf32>
    %cst_6 = arith.constant 0.00999999977 : f32
    %11 = vector.broadcast %cst_6 : f32 to vector<8x128xf32>
    %12 = arith.mulf %11, %8 : vector<8x128xf32>
    %13 = arith.select %10, %8, %12 : vector<8x128xi1>, vector<8x128xf32>
    %c0_7 = arith.constant 0 : index
    %c0_8 = arith.constant 0 : index
    %14 = vector.load %arg3[%c0_7, %c0_8] : memref<128x128xf32, #tpu.memory_space<vmem>>, vector<128x128xf32>
    %cst_9 = arith.constant dense<0.000000e+00> : vector<8x128xf32>
    %15 = tpu.matmul %13, %14, %cst_9 {dimension_numbers = #tpu.dot_dimension_numbers<[1], [0], [0], [1], [0, 0, 1, 1], [], []>} : vector<8x128xf32>, vector<128x128xf32>, vector<8x128xf32> -> vector<8x128xf32>
    %16 = vector.extract_strided_slice %0 {offsets = [1, 0], sizes = [1, 128], strides = [1, 1]} : vector<2x128xf32> to vector<1x128xf32>
    %17 = vector.shape_cast %16 : vector<1x128xf32> to vector<128xf32>
    %18 = vector.shape_cast %17 : vector<128xf32> to vector<1x128xf32>
    %19 = vector.broadcast %18 : vector<1x128xf32> to vector<8x128xf32>
    %20 = arith.addf %15, %19 : vector<8x128xf32>
    %c0_10 = arith.constant 0 : index
    %c0_11 = arith.constant 0 : index
    %21 = vector.load %arg5[%c0_10, %c0_11] : memref<8x128xf32, #tpu.memory_space<vmem>>, vector<8x128xf32>
    tpu.vector_store %arg5[%c0_10, %c0_11], %20 {strides = array<i32>} : memref<8x128xf32, #tpu.memory_space<vmem>>, vector<8x128xf32>,
    return
  }
  func.func @transform_0(%arg0: i32) -> (i32, i32) {
    %c0_i32 = arith.constant 0 : i32
    %c0_i32_0 = arith.constant 0 : i32
    return %arg0, %c0_i32 : i32, i32
  }
  func.func @transform_1(%arg0: i32) -> (i32, i32) {
    %c0_i32 = arith.constant 0 : i32
    %c0_i32_0 = arith.constant 0 : i32
    %c0_i32_1 = arith.constant 0 : i32
    return %c0_i32, %c0_i32_0 : i32, i32
  }
  func.func @transform_2(%arg0: i32) -> (i32, i32) {
    %c0_i32 = arith.constant 0 : i32
    %c0_i32_0 = arith.constant 0 : i32
    %c0_i32_1 = arith.constant 0 : i32
    return %c0_i32, %c0_i32_0 : i32, i32
  }
  func.func @transform_3(%arg0: i32) -> (i32, i32) {
    %c0_i32 = arith.constant 0 : i32
    %c0_i32_0 = arith.constant 0 : i32
    %c0_i32_1 = arith.constant 0 : i32
    return %c0_i32, %c0_i32_0 : i32, i32
  }
  func.func @transform_4(%arg0: i32) -> (i32, i32) {
    %c0_i32 = arith.constant 0 : i32
    %c0_i32_0 = arith.constant 0 : i32
    return %arg0, %c0_i32 : i32, i32
  }
}

</mosaic_0001>

<llo_original>
// kernel: tpu_custom_call.1
$region0: #{tpu_custom_call.1}
  #allocation0 [shape = 'u32[]', space=smem, size = 0x4, offset = 0x4, fixed_abs, tag = 'smem constant byte address 0x4 - core index']
  #allocation1 [shape = 'u32[144,128]{1,0:T(1,128)}', space=vmem, size = 0x12000, scoped, tag = 'internal scratch']
  %s0 = inlined_call_operand.hbm [shape: bf16[8,1024], index: 0, kind: input, shape index: {}]
  %s1 = inlined_call_operand.hbm [shape: bf16[1024,128], index: 1, kind: input, shape index: {}]
  %s2 = inlined_call_operand.hbm [shape: f32[128,128], index: 2, kind: input, shape index: {}]
  %s3 = inlined_call_operand.vmem [shape: f32[2,128], index: 3, kind: input, shape index: {}]
  %s4 = inlined_call_operand.hbm [shape: f32[8,128], index: 4, kind: output, shape index: {}]
  %s5 = sld [smem:[#allocation0]]
  $region38: #{tpu_custom_call.1} parent=0
    _
  %s7 = ssub.s32 1, %s5
  %s8 = scalar_select 0, %s7, %s5
  $region1: #{tpu_custom_call.1} parent=0
    #allocation2 [shape = 'u8[16384]{0}', space=vmem, size = 0x4000, scoped, tag = 'input window, operand 0, single buffered']
    #allocation3 [shape = 's32[1]{0}', space=sflag, size = 0x4, scoped, tag = 'scoped memory for tpu_custom_call.1']
    #allocation4 [shape = 's32[1]{0}', space=sflag, size = 0x4, scoped, tag = 'scoped memory for tpu_custom_call.1']
    #allocation5 [shape = 'u8[262144]{0}', space=vmem, size = 0x40000, scoped, tag = 'input window, operand 1, single buffered']
    #allocation6 [shape = 's32[1]{0}', space=sflag, size = 0x4, scoped, tag = 'scoped memory for tpu_custom_call.1']
    #allocation7 [shape = 'u8[65536]{0}', space=vmem, size = 0x10000, scoped, tag = 'input window, operand 2, single buffered']
    #allocation8 [shape = 'u8[4096]{0}', space=vmem, size = 0x1000, scoped, tag = 'output window, operand 0, single buffered']
    %9 = vsyncpa [#allocation3], 0
    %10 = vsyncpa [#allocation6], 0
    %11 = vsyncpa [#allocation4], 0
    // Predicated region
    $region2: #{tpu_custom_call.1} parent=1 // pred_check
      _
    $region3: #{tpu_custom_call.1} parent=1 // pred_check_branch
      %13 = sbr.rel (0) target = $region5
    $region4: #{tpu_custom_call.1} parent=1 // pred_region
      %s15 = ssub.s32 512, 512
      %16 = vsyncadd [#allocation3], %s15
      %s18 = sshll.u32 [#allocation2], 4
      %s19 = int_to_ptr.vmem [resolvable:$true] %s18
      %21 = dma.hbm_to_vmem [thread:$0]  %s0, 512, %s19, [#allocation3]
    $region5: #{tpu_custom_call.1} parent=1 // pred_fallthru
      _
    // Predicated region
    $region6: #{tpu_custom_call.1} parent=1 // pred_check
      _
    $region7: #{tpu_custom_call.1} parent=1 // pred_check_branch
      %23 = sbr.rel (0) target = $region9
    $region8: #{tpu_custom_call.1} parent=1 // pred_region
      %s25 = ssub.s32 8192, 8192
      %26 = vsyncadd [#allocation6], %s25
      %s27 = sshll.u32 [#allocation5], 4
      %s28 = int_to_ptr.vmem [resolvable:$true] %s27
      %33 = dma.hbm_to_vmem [thread:$0]  %s1, 8192, %s28, [#allocation6], 64, 64, 4
    $region9: #{tpu_custom_call.1} parent=1 // pred_fallthru
      _
    // Predicated region
    $region10: #{tpu_custom_call.1} parent=1 // pred_check
      _
    $region11: #{tpu_custom_call.1} parent=1 // pred_check_branch
      %35 = sbr.rel (0) target = $region13
    $region12: #{tpu_custom_call.1} parent=1 // pred_region
      %s37 = ssub.s32 2048, 2048
      %38 = vsyncadd [#allocation6], %s37
      %s39 = sshll.u32 [#allocation7], 4
      %s40 = int_to_ptr.vmem [resolvable:$true] %s39
      %45 = dma.hbm_to_vmem [thread:$0]  %s2, 2048, %s40, [#allocation6], 128, 128, 8
    $region13: #{tpu_custom_call.1} parent=1 // pred_fallthru
      _
    // Predicated region
    $region14: #{tpu_custom_call.1} parent=1 // pred_check
      _
    $region15: #{tpu_custom_call.1} parent=1 // pred_check_branch
      %47 = sbr.rel (0) target = $region17
    $region16: #{tpu_custom_call.1} parent=1 // pred_region
      _
    $region17: #{tpu_custom_call.1} parent=1 // pred_fallthru
      _
    // Predicated region
    $region18: #{tpu_custom_call.1} parent=1 // pred_check
      _
    $region19: #{tpu_custom_call.1} parent=1 // pred_check_branch
      %49 = sbr.rel (0) target = $region21
    $region20: #{tpu_custom_call.1} parent=1 // pred_region
      %50 = dma.done [#allocation3], 512
    $region21: #{tpu_custom_call.1} parent=1 // pred_fallthru
      _
    // Predicated region
    $region22: #{tpu_custom_call.1} parent=1 // pred_check
      _
    $region23: #{tpu_custom_call.1} parent=1 // pred_check_branch
      %52 = sbr.rel (0) target = $region25
    $region24: #{tpu_custom_call.1} parent=1 // pred_region
      %53 = dma.done [#allocation6], 8192
    $region25: #{tpu_custom_call.1} parent=1 // pred_fallthru
      _
    // Predicated region
    $region26: #{tpu_custom_call.1} parent=1 // pred_check
      _
    $region27: #{tpu_custom_call.1} parent=1 // pred_check_branch
      %55 = sbr.rel (0) target = $region29
    $region28: #{tpu_custom_call.1} parent=1 // pred_region
      %56 = dma.done [#allocation6], 2048
    $region29: #{tpu_custom_call.1} parent=1 // pred_fallthru
      _
    %v58 = vld [vmem:[%s3] sm:$0x3]
    %v59 = vld [vmem:[#allocation2] sm:$0xff]
    %v60 = vld [vmem:[#allocation2 + $0x8] sm:$0xff]
    %v61 = vld [vmem:[#allocation2 + $0x10] sm:$0xff]
    %v62 = vld [vmem:[#allocation2 + $0x18] sm:$0xff]
    %v63 = vld [vmem:[#allocation5] sm:$0xf]
    %v64 = vld [vmem:[#allocation5 + $0x4] sm:$0xf]
    %v65 = vld [vmem:[#allocation5 + $0x8] sm:$0xf]
    %v66 = vld [vmem:[#allocation5 + $0xc] sm:$0xf]
    %v67 = vld [vmem:[#allocation5 + $0x10] sm:$0xf]
    %v68 = vld [vmem:[#allocation5 + $0x14] sm:$0xf]
    %v69 = vld [vmem:[#allocation5 + $0x18] sm:$0xf]
    %v70 = vld [vmem:[#allocation5 + $0x1c] sm:$0xf]
    %v71 = vld [vmem:[#allocation5 + $0x20] sm:$0xf]
    %v72 = vld [vmem:[#allocation5 + $0x24] sm:$0xf]
    %v73 = vld [vmem:[#allocation5 + $0x28] sm:$0xf]
    %v74 = vld [vmem:[#allocation5 + $0x2c] sm:$0xf]
    %v75 = vld [vmem:[#allocation5 + $0x30] sm:$0xf]
    %v76 = vld [vmem:[#allocation5 + $0x34] sm:$0xf]
    %v77 = vld [vmem:[#allocation5 + $0x38] sm:$0xf]
    %v78 = vld [vmem:[#allocation5 + $0x3c] sm:$0xf]
    %v79 = vld [vmem:[#allocation5 + $0x40] sm:$0xf]
    %v80 = vld [vmem:[#allocation5 + $0x44] sm:$0xf]
    %v81 = vld [vmem:[#allocation5 + $0x48] sm:$0xf]
    %v82 = vld [vmem:[#allocation5 + $0x4c] sm:$0xf]
    %v83 = vld [vmem:[#allocation5 + $0x50] sm:$0xf]
    %v84 = vld [vmem:[#allocation5 + $0x54] sm:$0xf]
    %v85 = vld [vmem:[#allocation5 + $0x58] sm:$0xf]
    %v86 = vld [vmem:[#allocation5 + $0x5c] sm:$0xf]
    %v87 = vld [vmem:[#allocation5 + $0x60] sm:$0xf]
    %v88 = vld [vmem:[#allocation5 + $0x64] sm:$0xf]
    %v89 = vld [vmem:[#allocation5 + $0x68] sm:$0xf]
    %v90 = vld [vmem:[#allocation5 + $0x6c] sm:$0xf]
    %v91 = vld [vmem:[#allocation5 + $0x70] sm:$0xf]
    %v92 = vld [vmem:[#allocation5 + $0x74] sm:$0xf]
    %v93 = vld [vmem:[#allocation5 + $0x78] sm:$0xf]
    %v94 = vld [vmem:[#allocation5 + $0x7c] sm:$0xf]
    %v95 = vld [vmem:[#allocation5 + $0x80] sm:$0xf]
    %v96 = vld [vmem:[#allocation5 + $0x84] sm:$0xf]
    %v97 = vld [vmem:[#allocation5 + $0x88] sm:$0xf]
    %v98 = vld [vmem:[#allocation5 + $0x8c] sm:$0xf]
    %v99 = vld [vmem:[#allocation5 + $0x90] sm:$0xf]
    %v100 = vld [vmem:[#allocation5 + $0x94] sm:$0xf]
    %v101 = vld [vmem:[#allocation5 + $0x98] sm:$0xf]
    %v102 = vld [vmem:[#allocation5 + $0x9c] sm:$0xf]
    %v103 = vld [vmem:[#allocation5 + $0xa0] sm:$0xf]
    %v104 = vld [vmem:[#allocation5 + $0xa4] sm:$0xf]
    %v105 = vld [vmem:[#allocation5 + $0xa8] sm:$0xf]
    %v106 = vld [vmem:[#allocation5 + $0xac] sm:$0xf]
    %v107 = vld [vmem:[#allocation5 + $0xb0] sm:$0xf]
    %v108 = vld [vmem:[#allocation5 + $0xb4] sm:$0xf]
    %v109 = vld [vmem:[#allocation5 + $0xb8] sm:$0xf]
    %v110 = vld [vmem:[#allocation5 + $0xbc] sm:$0xf]
    %v111 = vld [vmem:[#allocation5 + $0xc0] sm:$0xf]
    %v112 = vld [vmem:[#allocation5 + $0xc4] sm:$0xf]
    %v113 = vld [vmem:[#allocation5 + $0xc8] sm:$0xf]
    %v114 = vld [vmem:[#allocation5 + $0xcc] sm:$0xf]
    %v115 = vld [vmem:[#allocation5 + $0xd0] sm:$0xf]
    %v116 = vld [vmem:[#allocation5 + $0xd4] sm:$0xf]
    %v117 = vld [vmem:[#allocation5 + $0xd8] sm:$0xf]
    %v118 = vld [vmem:[#allocation5 + $0xdc] sm:$0xf]
    %v119 = vld [vmem:[#allocation5 + $0xe0] sm:$0xf]
    %v120 = vld [vmem:[#allocation5 + $0xe4] sm:$0xf]
    %v121 = vld [vmem:[#allocation5 + $0xe8] sm:$0xf]
    %v122 = vld [vmem:[#allocation5 + $0xec] sm:$0xf]
    %v123 = vld [vmem:[#allocation5 + $0xf0] sm:$0xf]
    %v124 = vld [vmem:[#allocation5 + $0xf4] sm:$0xf]
    %v125 = vld [vmem:[#allocation5 + $0xf8] sm:$0xf]
    %v126 = vld [vmem:[#allocation5 + $0xfc] sm:$0xf]
    %v127 = vld [vmem:[#allocation5 + $0x100] sm:$0xf]
    %v128 = vld [vmem:[#allocation5 + $0x104] sm:$0xf]
    %v129 = vld [vmem:[#allocation5 + $0x108] sm:$0xf]
    %v130 = vld [vmem:[#allocation5 + $0x10c] sm:$0xf]
    %v131 = vld [vmem:[#allocation5 + $0x110] sm:$0xf]
    %v132 = vld [vmem:[#allocation5 + $0x114] sm:$0xf]
    %v133 = vld [vmem:[#allocation5 + $0x118] sm:$0xf]
    %v134 = vld [vmem:[#allocation5 + $0x11c] sm:$0xf]
    %v135 = vld [vmem:[#allocation5 + $0x120] sm:$0xf]
    %v136 = vld [vmem:[#allocation5 + $0x124] sm:$0xf]
    %v137 = vld [vmem:[#allocation5 + $0x128] sm:$0xf]
    %v138 = vld [vmem:[#allocation5 + $0x12c] sm:$0xf]
    %v139 = vld [vmem:[#allocation5 + $0x130] sm:$0xf]
    %v140 = vld [vmem:[#allocation5 + $0x134] sm:$0xf]
    %v141 = vld [vmem:[#allocation5 + $0x138] sm:$0xf]
    %v142 = vld [vmem:[#allocation5 + $0x13c] sm:$0xf]
    %v143 = vld [vmem:[#allocation5 + $0x140] sm:$0xf]
    %v144 = vld [vmem:[#allocation5 + $0x144] sm:$0xf]
    %v145 = vld [vmem:[#allocation5 + $0x148] sm:$0xf]
    %v146 = vld [vmem:[#allocation5 + $0x14c] sm:$0xf]
    %v147 = vld [vmem:[#allocation5 + $0x150] sm:$0xf]
    %v148 = vld [vmem:[#allocation5 + $0x154] sm:$0xf]
    %v149 = vld [vmem:[#allocation5 + $0x158] sm:$0xf]
    %v150 = vld [vmem:[#allocation5 + $0x15c] sm:$0xf]
    %v151 = vld [vmem:[#allocation5 + $0x160] sm:$0xf]
    %v152 = vld [vmem:[#allocation5 + $0x164] sm:$0xf]
    %v153 = vld [vmem:[#allocation5 + $0x168] sm:$0xf]
    %v154 = vld [vmem:[#allocation5 + $0x16c] sm:$0xf]
    %v155 = vld [vmem:[#allocation5 + $0x170] sm:$0xf]
    %v156 = vld [vmem:[#allocation5 + $0x174] sm:$0xf]
    %v157 = vld [vmem:[#allocation5 + $0x178] sm:$0xf]
    %v158 = vld [vmem:[#allocation5 + $0x17c] sm:$0xf]
    %v159 = vld [vmem:[#allocation5 + $0x180] sm:$0xf]
    %v160 = vld [vmem:[#allocation5 + $0x184] sm:$0xf]
    %v161 = vld [vmem:[#allocation5 + $0x188] sm:$0xf]
    %v162 = vld [vmem:[#allocation5 + $0x18c] sm:$0xf]
    %v163 = vld [vmem:[#allocation5 + $0x190] sm:$0xf]
    %v164 = vld [vmem:[#allocation5 + $0x194] sm:$0xf]
    %v165 = vld [vmem:[#allocation5 + $0x198] sm:$0xf]
    %v166 = vld [vmem:[#allocation5 + $0x19c] sm:$0xf]
    %v167 = vld [vmem:[#allocation5 + $0x1a0] sm:$0xf]
    %v168 = vld [vmem:[#allocation5 + $0x1a4] sm:$0xf]
    %v169 = vld [vmem:[#allocation5 + $0x1a8] sm:$0xf]
    %v170 = vld [vmem:[#allocation5 + $0x1ac] sm:$0xf]
    %v171 = vld [vmem:[#allocation5 + $0x1b0] sm:$0xf]
    %v172 = vld [vmem:[#allocation5 + $0x1b4] sm:$0xf]
    %v173 = vld [vmem:[#allocation5 + $0x1b8] sm:$0xf]
    %v174 = vld [vmem:[#allocation5 + $0x1bc] sm:$0xf]
    %v175 = vld [vmem:[#allocation5 + $0x1c0] sm:$0xf]
    %v176 = vld [vmem:[#allocation5 + $0x1c4] sm:$0xf]
    %v177 = vld [vmem:[#allocation5 + $0x1c8] sm:$0xf]
    %v178 = vld [vmem:[#allocation5 + $0x1cc] sm:$0xf]
    %v179 = vld [vmem:[#allocation5 + $0x1d0] sm:$0xf]
    %v180 = vld [vmem:[#allocation5 + $0x1d4] sm:$0xf]
    %v181 = vld [vmem:[#allocation5 + $0x1d8] sm:$0xf]
    %v182 = vld [vmem:[#allocation5 + $0x1dc] sm:$0xf]
    %v183 = vld [vmem:[#allocation5 + $0x1e0] sm:$0xf]
    %v184 = vld [vmem:[#allocation5 + $0x1e4] sm:$0xf]
    %v185 = vld [vmem:[#allocation5 + $0x1e8] sm:$0xf]
    %v186 = vld [vmem:[#allocation5 + $0x1ec] sm:$0xf]
    %v187 = vld [vmem:[#allocation5 + $0x1f0] sm:$0xf]
    %v188 = vld [vmem:[#allocation5 + $0x1f4] sm:$0xf]
    %v189 = vld [vmem:[#allocation5 + $0x1f8] sm:$0xf]
    %v190 = vld [vmem:[#allocation5 + $0x1fc] sm:$0xf]
    %v191 = vlaneseq
    %v192 = vshrl.u32 %v191, 7
    %v193 = vsub.s32 0, %v192
    %v194 = vrot.slane %v58, %v193
    %v199 = vunpack.c.l.b16 %v59
    %v200 = vunpack.c.h.b16 %v59
    %v201 = vunpack.c.l.b16 %v60
    %v202 = vunpack.c.h.b16 %v60
    %v203 = vunpack.c.l.b16 %v61
    %v204 = vunpack.c.h.b16 %v61
    %v205 = vunpack.c.l.b16 %v62
    %v206 = vunpack.c.h.b16 %v62
    %v207 = vpack.c.b16 %v199, %v199
    %v208 = vpack.c.b16 %v200, %v200
    %v209 = vpack.c.b16 %v201, %v201
    %v210 = vpack.c.b16 %v202, %v202
    %v211 = vpack.c.b16 %v203, %v203
    %v212 = vpack.c.b16 %v204, %v204
    %v213 = vpack.c.b16 %v205, %v205
    %v214 = vpack.c.b16 %v206, %v206
    %v351 = vunpack.c.l.b16 %v63
    %v352 = vunpack.c.l.b16 %v64
    %v353 = vunpack.c.l.b16 %v65
    %v354 = vunpack.c.l.b16 %v66
    %v355 = vunpack.c.l.b16 %v67
    %v356 = vunpack.c.l.b16 %v68
    %v357 = vunpack.c.l.b16 %v69
    %v358 = vunpack.c.l.b16 %v70
    %v359 = vunpack.c.l.b16 %v71
    %v360 = vunpack.c.l.b16 %v72
    %v361 = vunpack.c.l.b16 %v73
    %v362 = vunpack.c.l.b16 %v74
    %v363 = vunpack.c.l.b16 %v75
    %v364 = vunpack.c.l.b16 %v76
    %v365 = vunpack.c.l.b16 %v77
    %v366 = vunpack.c.l.b16 %v78
    %v367 = vunpack.c.l.b16 %v79
    %v368 = vunpack.c.l.b16 %v80
    %v369 = vunpack.c.l.b16 %v81
    %v370 = vunpack.c.l.b16 %v82
    %v371 = vunpack.c.l.b16 %v83
    %v372 = vunpack.c.l.b16 %v84
    %v373 = vunpack.c.l.b16 %v85
    %v374 = vunpack.c.l.b16 %v86
    %v375 = vunpack.c.l.b16 %v87
    %v376 = vunpack.c.l.b16 %v88
    %v377 = vunpack.c.l.b16 %v89
    %v378 = vunpack.c.l.b16 %v90
    %v379 = vunpack.c.l.b16 %v91
    %v380 = vunpack.c.l.b16 %v92
    %v381 = vunpack.c.l.b16 %v93
    %v382 = vunpack.c.l.b16 %v94
    %v383 = vunpack.c.l.b16 %v95
    %v384 = vunpack.c.l.b16 %v96
    %v385 = vunpack.c.l.b16 %v97
    %v386 = vunpack.c.l.b16 %v98
    %v387 = vunpack.c.l.b16 %v99
    %v388 = vunpack.c.l.b16 %v100
    %v389 = vunpack.c.l.b16 %v101
    %v390 = vunpack.c.l.b16 %v102
    %v391 = vunpack.c.l.b16 %v103
    %v392 = vunpack.c.l.b16 %v104
    %v393 = vunpack.c.l.b16 %v105
    %v394 = vunpack.c.l.b16 %v106
    %v395 = vunpack.c.l.b16 %v107
    %v396 = vunpack.c.l.b16 %v108
    %v397 = vunpack.c.l.b16 %v109
    %v398 = vunpack.c.l.b16 %v110
    %v399 = vunpack.c.l.b16 %v111
    %v400 = vunpack.c.l.b16 %v112
    %v401 = vunpack.c.l.b16 %v113
    %v402 = vunpack.c.l.b16 %v114
    %v403 = vunpack.c.l.b16 %v115
    %v404 = vunpack.c.l.b16 %v116
    %v405 = vunpack.c.l.b16 %v117
    %v406 = vunpack.c.l.b16 %v118
    %v407 = vunpack.c.l.b16 %v119
    %v408 = vunpack.c.l.b16 %v120
    %v409 = vunpack.c.l.b16 %v121
    %v410 = vunpack.c.l.b16 %v122
    %v411 = vunpack.c.l.b16 %v123
    %v412 = vunpack.c.l.b16 %v124
    %v413 = vunpack.c.l.b16 %v125
    %v414 = vunpack.c.l.b16 %v126
    %v415 = vunpack.c.l.b16 %v127
    %v416 = vunpack.c.l.b16 %v128
    %v417 = vunpack.c.l.b16 %v129
    %v418 = vunpack.c.l.b16 %v130
    %v419 = vunpack.c.l.b16 %v131
    %v420 = vunpack.c.l.b16 %v132
    %v421 = vunpack.c.l.b16 %v133
    %v422 = vunpack.c.l.b16 %v134
    %v423 = vunpack.c.l.b16 %v135
    %v424 = vunpack.c.l.b16 %v136
    %v425 = vunpack.c.l.b16 %v137
    %v426 = vunpack.c.l.b16 %v138
    %v427 = vunpack.c.l.b16 %v139
    %v428 = vunpack.c.l.b16 %v140
    %v429 = vunpack.c.l.b16 %v141
    %v430 = vunpack.c.l.b16 %v142
    %v431 = vunpack.c.l.b16 %v143
    %v432 = vunpack.c.l.b16 %v144
    %v433 = vunpack.c.l.b16 %v145
    %v434 = vunpack.c.l.b16 %v146
    %v435 = vunpack.c.l.b16 %v147
    %v436 = vunpack.c.l.b16 %v148
    %v437 = vunpack.c.l.b16 %v149
    %v438 = vunpack.c.l.b16 %v150
    %v439 = vunpack.c.l.b16 %v151
    %v440 = vunpack.c.l.b16 %v152
    %v441 = vunpack.c.l.b16 %v153
    %v442 = vunpack.c.l.b16 %v154
    %v443 = vunpack.c.l.b16 %v155
    %v444 = vunpack.c.l.b16 %v156
    %v445 = vunpack.c.l.b16 %v157
    %v446 = vunpack.c.l.b16 %v158
    %v447 = vunpack.c.l.b16 %v159
    %v448 = vunpack.c.l.b16 %v160
    %v449 = vunpack.c.l.b16 %v161
    %v450 = vunpack.c.l.b16 %v162
    %v451 = vunpack.c.l.b16 %v163
    %v452 = vunpack.c.l.b16 %v164
    %v453 = vunpack.c.l.b16 %v165
    %v454 = vunpack.c.l.b16 %v166
    %v455 = vunpack.c.l.b16 %v167
    %v456 = vunpack.c.l.b16 %v168
    %v457 = vunpack.c.l.b16 %v169
    %v458 = vunpack.c.l.b16 %v170
    %v459 = vunpack.c.l.b16 %v171
    %v460 = vunpack.c.l.b16 %v172
    %v461 = vunpack.c.l.b16 %v173
    %v462 = vunpack.c.l.b16 %v174
    %v463 = vunpack.c.l.b16 %v175
    %v464 = vunpack.c.l.b16 %v176
    %v465 = vunpack.c.l.b16 %v177
    %v466 = vunpack.c.l.b16 %v178
    %v467 = vunpack.c.l.b16 %v179
    %v468 = vunpack.c.l.b16 %v180
    %v469 = vunpack.c.l.b16 %v181
    %v470 = vunpack.c.l.b16 %v182
    %v471 = vunpack.c.l.b16 %v183
    %v472 = vunpack.c.l.b16 %v184
    %v473 = vunpack.c.l.b16 %v185
    %v474 = vunpack.c.l.b16 %v186
    %v475 = vunpack.c.l.b16 %v187
    %v476 = vunpack.c.l.b16 %v188
    %v477 = vunpack.c.l.b16 %v189
    %v478 = vunpack.c.l.b16 %v190
    %v479 = vpack.c.b16 %v352, %v351
    %v480 = vpack.c.b16 %v354, %v353
    %v481 = vpack.c.b16 %v356, %v355
    %v482 = vpack.c.b16 %v358, %v357
    %v483 = vpack.c.b16 %v360, %v359
    %v484 = vpack.c.b16 %v362, %v361
    %v485 = vpack.c.b16 %v364, %v363
    %v486 = vpack.c.b16 %v366, %v365
    %v487 = vpack.c.b16 %v368, %v367
    %v488 = vpack.c.b16 %v370, %v369
    %v489 = vpack.c.b16 %v372, %v371
    %v490 = vpack.c.b16 %v374, %v373
    %v491 = vpack.c.b16 %v376, %v375
    %v492 = vpack.c.b16 %v378, %v377
    %v493 = vpack.c.b16 %v380, %v379
    %v494 = vpack.c.b16 %v382, %v381
    %v495 = vpack.c.b16 %v384, %v383
    %v496 = vpack.c.b16 %v386, %v385
    %v497 = vpack.c.b16 %v388, %v387
    %v498 = vpack.c.b16 %v390, %v389
    %v499 = vpack.c.b16 %v392, %v391
    %v500 = vpack.c.b16 %v394, %v393
    %v501 = vpack.c.b16 %v396, %v395
    %v502 = vpack.c.b16 %v398, %v397
    %v503 = vpack.c.b16 %v400, %v399
    %v504 = vpack.c.b16 %v402, %v401
    %v505 = vpack.c.b16 %v404, %v403
    %v506 = vpack.c.b16 %v406, %v405
    %v507 = vpack.c.b16 %v408, %v407
    %v508 = vpack.c.b16 %v410, %v409
    %v509 = vpack.c.b16 %v412, %v411
    %v510 = vpack.c.b16 %v414, %v413
    %v511 = vpack.c.b16 %v416, %v415
    %v512 = vpack.c.b16 %v418, %v417
    %v513 = vpack.c.b16 %v420, %v419
    %v514 = vpack.c.b16 %v422, %v421
    %v515 = vpack.c.b16 %v424, %v423
    %v516 = vpack.c.b16 %v426, %v425
    %v517 = vpack.c.b16 %v428, %v427
    %v518 = vpack.c.b16 %v430, %v429
    %v519 = vpack.c.b16 %v432, %v431
    %v520 = vpack.c.b16 %v434, %v433
    %v521 = vpack.c.b16 %v436, %v435
    %v522 = vpack.c.b16 %v438, %v437
    %v523 = vpack.c.b16 %v440, %v439
    %v524 = vpack.c.b16 %v442, %v441
    %v525 = vpack.c.b16 %v444, %v443
    %v526 = vpack.c.b16 %v446, %v445
    %v527 = vpack.c.b16 %v448, %v447
    %v528 = vpack.c.b16 %v450, %v449
    %v529 = vpack.c.b16 %v452, %v451
    %v530 = vpack.c.b16 %v454, %v453
    %v531 = vpack.c.b16 %v456, %v455
    %v532 = vpack.c.b16 %v458, %v457
    %v533 = vpack.c.b16 %v460, %v459
    %v534 = vpack.c.b16 %v462, %v461
    %v535 = vpack.c.b16 %v464, %v463
    %v536 = vpack.c.b16 %v466, %v465
    %v537 = vpack.c.b16 %v468, %v467
    %v538 = vpack.c.b16 %v470, %v469
    %v539 = vpack.c.b16 %v472, %v471
    %v540 = vpack.c.b16 %v474, %v473
    %v541 = vpack.c.b16 %v476, %v475
    %v542 = vpack.c.b16 %v478, %v477
    %607 = vmatprep.subr.bf16.mxu0 0
    %608 = vmatpush1.bf16.msra.mxu0 %v486
    %609 = vmatprep.subr.bf16.mxu0 0
    %610 = vmatpush1.bf16.msra.mxu0 %v485
    %611 = vmatprep.subr.bf16.mxu0 0
    %612 = vmatpush1.bf16.msra.mxu0 %v484
    %613 = vmatprep.subr.bf16.mxu0 0
    %614 = vmatpush1.bf16.msra.mxu0 %v483
    %615 = vmatprep.subr.bf16.mxu0 0
    %616 = vmatpush1.bf16.msra.mxu0 %v482
    %617 = vmatprep.subr.bf16.mxu0 0
    %618 = vmatpush1.bf16.msra.mxu0 %v481
    %619 = vmatprep.subr.bf16.mxu0 0
    %620 = vmatpush1.bf16.msra.mxu0 %v480
    %621 = vmatprep.subr.bf16.mxu0 0
    %622 = vmatpush1.bf16.msra.mxu0 %v479
    %623 = vmatprep.subr.bf16.mxu0 0
    %624 = vmatpush2.bf16.msra.mxu0 %v494
    %625 = vmatprep.subr.bf16.mxu0 0
    %626 = vmatpush2.bf16.msra.mxu0 %v493
    %627 = vmatprep.subr.bf16.mxu0 0
    %628 = vmatpush2.bf16.msra.mxu0 %v492
    %629 = vmatprep.subr.bf16.mxu0 0
    %630 = vmatpush2.bf16.msra.mxu0 %v491
    %631 = vmatprep.subr.bf16.mxu0 0
    %632 = vmatpush2.bf16.msra.mxu0 %v490
    %633 = vmatprep.subr.bf16.mxu0 0
    %634 = vmatpush2.bf16.msra.mxu0 %v489
    %635 = vmatprep.subr.bf16.mxu0 0
    %636 = vmatpush2.bf16.msra.mxu0 %v488
    %637 = vmatprep.subr.bf16.mxu0 0
    %638 = vmatpush2.bf16.msra.mxu0 %v487
    %639 = vmatprep.mubr.bf16.mxu0 %v208
    %640 = vmatmul.mubr.bf16.gmra.mxu0 %v207
    %v641 = vpop.f32.mrf.mxu0
    %v642 = vadd.f32 %v194, %v641
    %v643 = vpop.f32.mrf.mxu0
    %v644 = vpop.f32.mrf.mxu0
    %v645 = vpop.f32.mrf.mxu0
    %646 = vdwg.mxu0
    %647 = vmatprep.subr.bf16.mxu0 0
    %648 = vmatpush1.bf16.msra.mxu0 %v502
    %649 = vmatprep.subr.bf16.mxu0 0
    %650 = vmatpush1.bf16.msra.mxu0 %v501
    %651 = vmatprep.subr.bf16.mxu0 0
    %652 = vmatpush1.bf16.msra.mxu0 %v500
    %653 = vmatprep.subr.bf16.mxu0 0
    %654 = vmatpush1.bf16.msra.mxu0 %v499
    %655 = vmatprep.subr.bf16.mxu0 0
    %656 = vmatpush1.bf16.msra.mxu0 %v498
    %657 = vmatprep.subr.bf16.mxu0 0
    %658 = vmatpush1.bf16.msra.mxu0 %v497
    %659 = vmatprep.subr.bf16.mxu0 0
    %660 = vmatpush1.bf16.msra.mxu0 %v496
    %661 = vmatprep.subr.bf16.mxu0 0
    %662 = vmatpush1.bf16.msra.mxu0 %v495
    %663 = vmatprep.subr.bf16.mxu0 0
    %664 = vmatpush2.bf16.msra.mxu0 %v510
    %665 = vmatprep.subr.bf16.mxu0 0
    %666 = vmatpush2.bf16.msra.mxu0 %v509
    %667 = vmatprep.subr.bf16.mxu0 0
    %668 = vmatpush2.bf16.msra.mxu0 %v508
    %669 = vmatprep.subr.bf16.mxu0 0
    %670 = vmatpush2.bf16.msra.mxu0 %v507
    %671 = vmatprep.subr.bf16.mxu0 0
    %672 = vmatpush2.bf16.msra.mxu0 %v506
    %673 = vmatprep.subr.bf16.mxu0 0
    %674 = vmatpush2.bf16.msra.mxu0 %v505
    %675 = vmatprep.subr.bf16.mxu0 0
    %676 = vmatpush2.bf16.msra.mxu0 %v504
    %677 = vmatprep.subr.bf16.mxu0 0
    %678 = vmatpush2.bf16.msra.mxu0 %v503
    %679 = vmatprep.mubr.bf16.mxu0 %v210
    %680 = vmatmul.mubr.bf16.gmra.mxu0 %v209
    %v681 = vpop.f32.mrf.mxu0
    %v682 = vadd.f32 %v642, %v681
    %v683 = vpop.f32.mrf.mxu0
    %v684 = vpop.f32.mrf.mxu0
    %v685 = vpop.f32.mrf.mxu0
    %686 = vdwg.mxu0
    %687 = vmatprep.subr.bf16.mxu0 0
    %688 = vmatpush1.bf16.msra.mxu0 %v518
    %689 = vmatprep.subr.bf16.mxu0 0
    %690 = vmatpush1.bf16.msra.mxu0 %v517
    %691 = vmatprep.subr.bf16.mxu0 0
    %692 = vmatpush1.bf16.msra.mxu0 %v516
    %693 = vmatprep.subr.bf16.mxu0 0
    %694 = vmatpush1.bf16.msra.mxu0 %v515
    %695 = vmatprep.subr.bf16.mxu0 0
    %696 = vmatpush1.bf16.msra.mxu0 %v514
    %697 = vmatprep.subr.bf16.mxu0 0
    %698 = vmatpush1.bf16.msra.mxu0 %v513
    %699 = vmatprep.subr.bf16.mxu0 0
    %700 = vmatpush1.bf16.msra.mxu0 %v512
    %701 = vmatprep.subr.bf16.mxu0 0
    %702 = vmatpush1.bf16.msra.mxu0 %v511
    %703 = vmatprep.subr.bf16.mxu0 0
    %704 = vmatpush2.bf16.msra.mxu0 %v526
    %705 = vmatprep.subr.bf16.mxu0 0
    %706 = vmatpush2.bf16.msra.mxu0 %v525
    %707 = vmatprep.subr.bf16.mxu0 0
    %708 = vmatpush2.bf16.msra.mxu0 %v524
    %709 = vmatprep.subr.bf16.mxu0 0
    %710 = vmatpush2.bf16.msra.mxu0 %v523
    %711 = vmatprep.subr.bf16.mxu0 0
    %712 = vmatpush2.bf16.msra.mxu0 %v522
    %713 = vmatprep.subr.bf16.mxu0 0
    %714 = vmatpush2.bf16.msra.mxu0 %v521
    %715 = vmatprep.subr.bf16.mxu0 0
    %716 = vmatpush2.bf16.msra.mxu0 %v520
    %717 = vmatprep.subr.bf16.mxu0 0
    %718 = vmatpush2.bf16.msra.mxu0 %v519
    %719 = vmatprep.mubr.bf16.mxu0 %v212
    %720 = vmatmul.mubr.bf16.gmra.mxu0 %v211
    %v721 = vpop.f32.mrf.mxu0
    %v722 = vadd.f32 %v682, %v721
    %v723 = vpop.f32.mrf.mxu0
    %v724 = vpop.f32.mrf.mxu0
    %v725 = vpop.f32.mrf.mxu0
    %726 = vdwg.mxu0
    %727 = vmatprep.subr.bf16.mxu0 0
    %728 = vmatpush1.bf16.msra.mxu0 %v534
    %729 = vmatprep.subr.bf16.mxu0 0
    %730 = vmatpush1.bf16.msra.mxu0 %v533
    %731 = vmatprep.subr.bf16.mxu0 0
    %732 = vmatpush1.bf16.msra.mxu0 %v532
    %733 = vmatprep.subr.bf16.mxu0 0
    %734 = vmatpush1.bf16.msra.mxu0 %v531
    %735 = vmatprep.subr.bf16.mxu0 0
    %736 = vmatpush1.bf16.msra.mxu0 %v530
    %737 = vmatprep.subr.bf16.mxu0 0
    %738 = vmatpush1.bf16.msra.mxu0 %v529
    %739 = vmatprep.subr.bf16.mxu0 0
    %740 = vmatpush1.bf16.msra.mxu0 %v528
    %741 = vmatprep.subr.bf16.mxu0 0
    %742 = vmatpush1.bf16.msra.mxu0 %v527
    %743 = vmatprep.subr.bf16.mxu0 0
    %744 = vmatpush2.bf16.msra.mxu0 %v542
    %745 = vmatprep.subr.bf16.mxu0 0
    %746 = vmatpush2.bf16.msra.mxu0 %v541
    %747 = vmatprep.subr.bf16.mxu0 0
    %748 = vmatpush2.bf16.msra.mxu0 %v540
    %749 = vmatprep.subr.bf16.mxu0 0
    %750 = vmatpush2.bf16.msra.mxu0 %v539
    %751 = vmatprep.subr.bf16.mxu0 0
    %752 = vmatpush2.bf16.msra.mxu0 %v538
    %753 = vmatprep.subr.bf16.mxu0 0
    %754 = vmatpush2.bf16.msra.mxu0 %v537
    %755 = vmatprep.subr.bf16.mxu0 0
    %756 = vmatpush2.bf16.msra.mxu0 %v536
    %757 = vmatprep.subr.bf16.mxu0 0
    %758 = vmatpush2.bf16.msra.mxu0 %v535
    %759 = vmatprep.mubr.bf16.mxu0 %v214
    %760 = vmatmul.mubr.bf16.gmra.mxu0 %v213
    %v761 = vpop.f32.mrf.mxu0
    %v762 = vadd.f32 %v722, %v761
    %v763 = vpop.f32.mrf.mxu0
    %v764 = vpop.f32.mrf.mxu0
    %v765 = vpop.f32.mrf.mxu0
    %766 = vdwg.mxu0
    %vm767 = vcmp.gt.f32.partialorder %v762, 0.0
    %v768 = vmul.f32 %v762, 0.01
    %v769 = vsel %vm767, %v762, %v768
    %v770 = vld [vmem:[#allocation7] sm:$0xff]
    %v771 = vld [vmem:[#allocation7 + $0x8] sm:$0xff]
    %v772 = vld [vmem:[#allocation7 + $0x10] sm:$0xff]
    %v773 = vld [vmem:[#allocation7 + $0x18] sm:$0xff]
    %v774 = vld [vmem:[#allocation7 + $0x20] sm:$0xff]
    %v775 = vld [vmem:[#allocation7 + $0x28] sm:$0xff]
    %v776 = vld [vmem:[#allocation7 + $0x30] sm:$0xff]
    %v777 = vld [vmem:[#allocation7 + $0x38] sm:$0xff]
    %v778 = vld [vmem:[#allocation7 + $0x40] sm:$0xff]
    %v779 = vld [vmem:[#allocation7 + $0x48] sm:$0xff]
    %v780 = vld [vmem:[#allocation7 + $0x50] sm:$0xff]
    %v781 = vld [vmem:[#allocation7 + $0x58] sm:$0xff]
    %v782 = vld [vmem:[#allocation7 + $0x60] sm:$0xff]
    %v783 = vld [vmem:[#allocation7 + $0x68] sm:$0xff]
    %v784 = vld [vmem:[#allocation7 + $0x70] sm:$0xff]
    %v785 = vld [vmem:[#allocation7 + $0x78] sm:$0xff]
    %v786 = vlaneseq
    %v787 = vshrl.u32 %v786, 7
    %v788 = vsub.s32 1, %v787
    %v789 = vrot.slane %v58, %v788
    %790 = vmatprep.subr.mxu0 0.0
    %791 = vmatpush1.msra.mxu0 %v785
    %792 = vmatprep.subr.mxu0 0.0
    %793 = vmatpush1.msra.mxu0 %v784
    %794 = vmatprep.subr.mxu0 0.0
    %795 = vmatpush1.msra.mxu0 %v783
    %796 = vmatprep.subr.mxu0 0.0
    %797 = vmatpush1.msra.mxu0 %v782
    %798 = vmatprep.subr.mxu0 0.0
    %799 = vmatpush1.msra.mxu0 %v781
    %800 = vmatprep.subr.mxu0 0.0
    %801 = vmatpush1.msra.mxu0 %v780
    %802 = vmatprep.subr.mxu0 0.0
    %803 = vmatpush1.msra.mxu0 %v779
    %804 = vmatprep.subr.mxu0 0.0
    %805 = vmatpush1.msra.mxu0 %v778
    %806 = vmatprep.subr.mxu0 0.0
    %807 = vmatpush1.msra.mxu0 %v777
    %808 = vmatprep.subr.mxu0 0.0
    %809 = vmatpush1.msra.mxu0 %v776
    %810 = vmatprep.subr.mxu0 0.0
    %811 = vmatpush1.msra.mxu0 %v775
    %812 = vmatprep.subr.mxu0 0.0
    %813 = vmatpush1.msra.mxu0 %v774
    %814 = vmatprep.subr.mxu0 0.0
    %815 = vmatpush1.msra.mxu0 %v773
    %816 = vmatprep.subr.mxu0 0.0
    %817 = vmatpush1.msra.mxu0 %v772
    %818 = vmatprep.subr.mxu0 0.0
    %819 = vmatpush1.msra.mxu0 %v771
    %820 = vmatprep.subr.mxu0 0.0
    %821 = vmatpush1.msra.mxu0 %v770
    %822 = vmatprep.subr.mxu0 0.0
    %823 = vmatpush2.msra.mxu0 0.0
    %824 = vmatprep.subr.mxu0 0.0
    %825 = vmatpush2.msra.mxu0 0.0
    %826 = vmatprep.subr.mxu0 0.0
    %827 = vmatpush2.msra.mxu0 0.0
    %828 = vmatprep.subr.mxu0 0.0
    %829 = vmatpush2.msra.mxu0 0.0
    %830 = vmatprep.subr.mxu0 0.0
    %831 = vmatpush2.msra.mxu0 0.0
    %832 = vmatprep.subr.mxu0 0.0
    %833 = vmatpush2.msra.mxu0 0.0
    %834 = vmatprep.subr.mxu0 0.0
    %835 = vmatpush2.msra.mxu0 0.0
    %836 = vmatprep.subr.mxu0 0.0
    %837 = vmatpush2.msra.mxu0 0.0
    %838 = vmatprep.subr.mxu0 0.0
    %839 = vmatpush2.msra.mxu0 0.0
    %840 = vmatprep.subr.mxu0 0.0
    %841 = vmatpush2.msra.mxu0 0.0
    %842 = vmatprep.subr.mxu0 0.0
    %843 = vmatpush2.msra.mxu0 0.0
    %844 = vmatprep.subr.mxu0 0.0
    %845 = vmatpush2.msra.mxu0 0.0
    %846 = vmatprep.subr.mxu0 0.0
    %847 = vmatpush2.msra.mxu0 0.0
    %848 = vmatprep.subr.mxu0 0.0
    %849 = vmatpush2.msra.mxu0 0.0
    %850 = vmatprep.subr.mxu0 0.0
    %851 = vmatpush2.msra.mxu0 0.0
    %852 = vmatprep.subr.mxu0 0.0
    %853 = vmatpush2.msra.mxu0 0.0
    %854 = vmatprep.mubr.f32.mxu0 0.0
    %855 = vmatmul.mubr.f32.gmra.mxu0 %v769
    %v856 = vpop.f32.mrf.mxu0
    %v857 = vadd.f32 %v789, %v856
    %v858 = vpop.f32.mrf.mxu0
    %859 = vdwg.mxu0
    %860 = vst [vmem:[#allocation8] sm:$0xff] %v857
    // Predicated region
    $region30: #{tpu_custom_call.1} parent=1 // pred_check
      _
    $region31: #{tpu_custom_call.1} parent=1 // pred_check_branch
      %862 = sbr.rel (0) target = $region33
    $region32: #{tpu_custom_call.1} parent=1 // pred_region
      %s864 = ssub.s32 128, 128
      %865 = vsyncadd [#allocation4], %s864
      %s867 = sshll.u32 [#allocation8], 4
      %s868 = int_to_ptr.vmem [resolvable:$true] %s867
      %870 = dma.vmem_to_hbm [thread:$0]  %s868, 128, %s4, [#allocation4]
    $region33: #{tpu_custom_call.1} parent=1 // pred_fallthru
      _
    // Predicated region
    $region34: #{tpu_custom_call.1} parent=1 // pred_check
      _
    $region35: #{tpu_custom_call.1} parent=1 // pred_check_branch
      %872 = sbr.rel (0) target = $region37
    $region36: #{tpu_custom_call.1} parent=1 // pred_region
      %873 = dma.done [#allocation4], 128
    $region37: #{tpu_custom_call.1} parent=1 // pred_fallthru
      _
    %874 = vsyncpa [#allocation3], 1
    %875 = vsyncpa [#allocation6], 1
    %876 = vsyncpa [#allocation4], 1

// kernel: tpu_custom_call.1
$region0: #{tpu_custom_call.1}
  #allocation0 [shape = 'u32[]', space=smem, size = 0x4, offset = 0x4, fixed_abs, tag = 'smem constant byte address 0x4 - core index']
  #allocation1 [shape = 'u32[144,128]{1,0:T(1,128)}', space=vmem, size = 0x12000, scoped, tag = 'internal scratch']
  %s0 = inlined_call_operand.hbm [shape: bf16[8,1024], index: 0, kind: input, shape index: {}]
  %s1 = inlined_call_operand.hbm [shape: bf16[1024,128], index: 1, kind: input, shape index: {}]
  %s2 = inlined_call_operand.hbm [shape: f32[128,128], index: 2, kind: input, shape index: {}]
  %s3 = inlined_call_operand.vmem [shape: f32[2,128], index: 3, kind: input, shape index: {}]
  %s4 = inlined_call_operand.hbm [shape: f32[8,128], index: 4, kind: output, shape index: {}]
  %s5 = sld [smem:[#allocation0]]
  $region38: #{tpu_custom_call.1} parent=0
    _
  %s7 = ssub.s32 1, %s5
  %s8 = scalar_select 0, %s7, %s5
  $region1: #{tpu_custom_call.1} parent=0
    #allocation2 [shape = 'u8[16384]{0}', space=vmem, size = 0x4000, scoped, tag = 'input window, operand 0, single buffered']
    #allocation3 [shape = 's32[1]{0}', space=sflag, size = 0x4, scoped, tag = 'scoped memory for tpu_custom_call.1']
    #allocation4 [shape = 's32[1]{0}', space=sflag, size = 0x4, scoped, tag = 'scoped memory for tpu_custom_call.1']
    #allocation5 [shape = 'u8[262144]{0}', space=vmem, size = 0x40000, scoped, tag = 'input window, operand 1, single buffered']
    #allocation6 [shape = 's32[1]{0}', space=sflag, size = 0x4, scoped, tag = 'scoped memory for tpu_custom_call.1']
    #allocation7 [shape = 'u8[65536]{0}', space=vmem, size = 0x10000, scoped, tag = 'input window, operand 2, single buffered']
    #allocation8 [shape = 'u8[4096]{0}', space=vmem, size = 0x1000, scoped, tag = 'output window, operand 0, single buffered']
    %9 = vsyncpa [#allocation3], 0
    %10 = vsyncpa [#allocation6], 0
    %11 = vsyncpa [#allocation4], 0
    // Predicated region
    $region2: #{tpu_custom_call.1} parent=1 // pred_check
      _
    $region3: #{tpu_custom_call.1} parent=1 // pred_check_branch
      %13 = sbr.rel (0) target = $region5
    $region4: #{tpu_custom_call.1} parent=1 // pred_region
      %s15 = ssub.s32 512, 512
      %16 = vsyncadd [#allocation3], %s15
      %s18 = sshll.u32 [#allocation2], 4
      %s19 = int_to_ptr.vmem [resolvable:$true] %s18
      %21 = dma.hbm_to_vmem [thread:$0]  %s0, 512, %s19, [#allocation3]
    $region5: #{tpu_custom_call.1} parent=1 // pred_fallthru
      _
    // Predicated region
    $region6: #{tpu_custom_call.1} parent=1 // pred_check
      _
    $region7: #{tpu_custom_call.1} parent=1 // pred_check_branch
      %23 = sbr.rel (0) target = $region9
    $region8: #{tpu_custom_call.1} parent=1 // pred_region
      %s25 = ssub.s32 8192, 8192
      %26 = vsyncadd [#allocation6], %s25
      %s27 = sshll.u32 [#allocation5], 4
      %s28 = int_to_ptr.vmem [resolvable:$true] %s27
      %33 = dma.hbm_to_vmem [thread:$0]  %s1, 8192, %s28, [#allocation6], 64, 64, 4
    $region9: #{tpu_custom_call.1} parent=1 // pred_fallthru
      _
    // Predicated region
    $region10: #{tpu_custom_call.1} parent=1 // pred_check
      _
    $region11: #{tpu_custom_call.1} parent=1 // pred_check_branch
      %35 = sbr.rel (0) target = $region13
    $region12: #{tpu_custom_call.1} parent=1 // pred_region
      %s37 = ssub.s32 2048, 2048
      %38 = vsyncadd [#allocation6], %s37
      %s39 = sshll.u32 [#allocation7], 4
      %s40 = int_to_ptr.vmem [resolvable:$true] %s39
      %45 = dma.hbm_to_vmem [thread:$0]  %s2, 2048, %s40, [#allocation6], 128, 128, 8
    $region13: #{tpu_custom_call.1} parent=1 // pred_fallthru
      _
    // Predicated region
    $region14: #{tpu_custom_call.1} parent=1 // pred_check
      _
    $region15: #{tpu_custom_call.1} parent=1 // pred_check_branch
      %47 = sbr.rel (0) target = $region17
    $region16: #{tpu_custom_call.1} parent=1 // pred_region
      _
    $region17: #{tpu_custom_call.1} parent=1 // pred_fallthru
      _
    // Predicated region
    $region18: #{tpu_custom_call.1} parent=1 // pred_check
      _
    $region19: #{tpu_custom_call.1} parent=1 // pred_check_branch
      %49 = sbr.rel (0) target = $region21
    $region20: #{tpu_custom_call.1} parent=1 // pred_region
      %50 = dma.done [#allocation3], 512
    $region21: #{tpu_custom_call.1} parent=1 // pred_fallthru
      _
    // Predicated region
    $region22: #{tpu_custom_call.1} parent=1 // pred_check
      _
    $region23: #{tpu_custom_call.1} parent=1 // pred_check_branch
      %52 = sbr.rel (0) target = $region25
    $region24: #{tpu_custom_call.1} parent=1 // pred_region
      %53 = dma.done [#allocation6], 8192
    $region25: #{tpu_custom_call.1} parent=1 // pred_fallthru
      _
    // Predicated region
    $region26: #{tpu_custom_call.1} parent=1 // pred_check
      _
    $region27: #{tpu_custom_call.1} parent=1 // pred_check_branch
      %55 = sbr.rel (0) target = $region29
    $region28: #{tpu_custom_call.1} parent=1 // pred_region
      %56 = dma.done [#allocation6], 2048
    $region29: #{tpu_custom_call.1} parent=1 // pred_fallthru
      _
    %v58 = vld [vmem:[%s3] sm:$0x3]
    %v59 = vld [vmem:[#allocation2] sm:$0xff]
    %v60 = vld [vmem:[#allocation2 + $0x8] sm:$0xff]
    %v61 = vld [vmem:[#allocation2 + $0x10] sm:$0xff]
    %v62 = vld [vmem:[#allocation2 + $0x18] sm:$0xff]
    %v63 = vld [vmem:[#allocation5] sm:$0xf]
    %v64 = vld [vmem:[#allocation5 + $0x4] sm:$0xf]
    %v65 = vld [vmem:[#allocation5 + $0x8] sm:$0xf]
    %v66 = vld [vmem:[#allocation5 + $0xc] sm:$0xf]
    %v67 = vld [vmem:[#allocation5 + $0x10] sm:$0xf]
    %v68 = vld [vmem:[#allocation5 + $0x14] sm:$0xf]
    %v69 = vld [vmem:[#allocation5 + $0x18] sm:$0xf]
    %v70 = vld [vmem:[#allocation5 + $0x1c] sm:$0xf]
    %v71 = vld [vmem:[#allocation5 + $0x20] sm:$0xf]
    %v72 = vld [vmem:[#allocation5 + $0x24] sm:$0xf]
    %v73 = vld [vmem:[#allocation5 + $0x28] sm:$0xf]
    %v74 = vld [vmem:[#allocation5 + $0x2c] sm:$0xf]
    %v75 = vld [vmem:[#allocation5 + $0x30] sm:$0xf]
    %v76 = vld [vmem:[#allocation5 + $0x34] sm:$0xf]
    %v77 = vld [vmem:[#allocation5 + $0x38] sm:$0xf]
    %v78 = vld [vmem:[#allocation5 + $0x3c] sm:$0xf]
    %v79 = vld [vmem:[#allocation5 + $0x40] sm:$0xf]
    %v80 = vld [vmem:[#allocation5 + $0x44] sm:$0xf]
    %v81 = vld [vmem:[#allocation5 + $0x48] sm:$0xf]
    %v82 = vld [vmem:[#allocation5 + $0x4c] sm:$0xf]
    %v83 = vld [vmem:[#allocation5 + $0x50] sm:$0xf]
    %v84 = vld [vmem:[#allocation5 + $0x54] sm:$0xf]
    %v85 = vld [vmem:[#allocation5 + $0x58] sm:$0xf]
    %v86 = vld [vmem:[#allocation5 + $0x5c] sm:$0xf]
    %v87 = vld [vmem:[#allocation5 + $0x60] sm:$0xf]
    %v88 = vld [vmem:[#allocation5 + $0x64] sm:$0xf]
    %v89 = vld [vmem:[#allocation5 + $0x68] sm:$0xf]
    %v90 = vld [vmem:[#allocation5 + $0x6c] sm:$0xf]
    %v91 = vld [vmem:[#allocation5 + $0x70] sm:$0xf]
    %v92 = vld [vmem:[#allocation5 + $0x74] sm:$0xf]
    %v93 = vld [vmem:[#allocation5 + $0x78] sm:$0xf]
    %v94 = vld [vmem:[#allocation5 + $0x7c] sm:$0xf]
    %v95 = vld [vmem:[#allocation5 + $0x80] sm:$0xf]
    %v96 = vld [vmem:[#allocation5 + $0x84] sm:$0xf]
    %v97 = vld [vmem:[#allocation5 + $0x88] sm:$0xf]
    %v98 = vld [vmem:[#allocation5 + $0x8c] sm:$0xf]
    %v99 = vld [vmem:[#allocation5 + $0x90] sm:$0xf]
    %v100 = vld [vmem:[#allocation5 + $0x94] sm:$0xf]
    %v101 = vld [vmem:[#allocation5 + $0x98] sm:$0xf]
    %v102 = vld [vmem:[#allocation5 + $0x9c] sm:$0xf]
    %v103 = vld [vmem:[#allocation5 + $0xa0] sm:$0xf]
    %v104 = vld [vmem:[#allocation5 + $0xa4] sm:$0xf]
    %v105 = vld [vmem:[#allocation5 + $0xa8] sm:$0xf]
    %v106 = vld [vmem:[#allocation5 + $0xac] sm:$0xf]
    %v107 = vld [vmem:[#allocation5 + $0xb0] sm:$0xf]
    %v108 = vld [vmem:[#allocation5 + $0xb4] sm:$0xf]
    %v109 = vld [vmem:[#allocation5 + $0xb8] sm:$0xf]
    %v110 = vld [vmem:[#allocation5 + $0xbc] sm:$0xf]
    %v111 = vld [vmem:[#allocation5 + $0xc0] sm:$0xf]
    %v112 = vld [vmem:[#allocation5 + $0xc4] sm:$0xf]
    %v113 = vld [vmem:[#allocation5 + $0xc8] sm:$0xf]
    %v114 = vld [vmem:[#allocation5 + $0xcc] sm:$0xf]
    %v115 = vld [vmem:[#allocation5 + $0xd0] sm:$0xf]
    %v116 = vld [vmem:[#allocation5 + $0xd4] sm:$0xf]
    %v117 = vld [vmem:[#allocation5 + $0xd8] sm:$0xf]
    %v118 = vld [vmem:[#allocation5 + $0xdc] sm:$0xf]
    %v119 = vld [vmem:[#allocation5 + $0xe0] sm:$0xf]
    %v120 = vld [vmem:[#allocation5 + $0xe4] sm:$0xf]
    %v121 = vld [vmem:[#allocation5 + $0xe8] sm:$0xf]
    %v122 = vld [vmem:[#allocation5 + $0xec] sm:$0xf]
    %v123 = vld [vmem:[#allocation5 + $0xf0] sm:$0xf]
    %v124 = vld [vmem:[#allocation5 + $0xf4] sm:$0xf]
    %v125 = vld [vmem:[#allocation5 + $0xf8] sm:$0xf]
    %v126 = vld [vmem:[#allocation5 + $0xfc] sm:$0xf]
    %v127 = vld [vmem:[#allocation5 + $0x100] sm:$0xf]
    %v128 = vld [vmem:[#allocation5 + $0x104] sm:$0xf]
    %v129 = vld [vmem:[#allocation5 + $0x108] sm:$0xf]
    %v130 = vld [vmem:[#allocation5 + $0x10c] sm:$0xf]
    %v131 = vld [vmem:[#allocation5 + $0x110] sm:$0xf]
    %v132 = vld [vmem:[#allocation5 + $0x114] sm:$0xf]
    %v133 = vld [vmem:[#allocation5 + $0x118] sm:$0xf]
    %v134 = vld [vmem:[#allocation5 + $0x11c] sm:$0xf]
    %v135 = vld [vmem:[#allocation5 + $0x120] sm:$0xf]
    %v136 = vld [vmem:[#allocation5 + $0x124] sm:$0xf]
    %v137 = vld [vmem:[#allocation5 + $0x128] sm:$0xf]
    %v138 = vld [vmem:[#allocation5 + $0x12c] sm:$0xf]
    %v139 = vld [vmem:[#allocation5 + $0x130] sm:$0xf]
    %v140 = vld [vmem:[#allocation5 + $0x134] sm:$0xf]
    %v141 = vld [vmem:[#allocation5 + $0x138] sm:$0xf]
    %v142 = vld [vmem:[#allocation5 + $0x13c] sm:$0xf]
    %v143 = vld [vmem:[#allocation5 + $0x140] sm:$0xf]
    %v144 = vld [vmem:[#allocation5 + $0x144] sm:$0xf]
    %v145 = vld [vmem:[#allocation5 + $0x148] sm:$0xf]
    %v146 = vld [vmem:[#allocation5 + $0x14c] sm:$0xf]
    %v147 = vld [vmem:[#allocation5 + $0x150] sm:$0xf]
    %v148 = vld [vmem:[#allocation5 + $0x154] sm:$0xf]
    %v149 = vld [vmem:[#allocation5 + $0x158] sm:$0xf]
    %v150 = vld [vmem:[#allocation5 + $0x15c] sm:$0xf]
    %v151 = vld [vmem:[#allocation5 + $0x160] sm:$0xf]
    %v152 = vld [vmem:[#allocation5 + $0x164] sm:$0xf]
    %v153 = vld [vmem:[#allocation5 + $0x168] sm:$0xf]
    %v154 = vld [vmem:[#allocation5 + $0x16c] sm:$0xf]
    %v155 = vld [vmem:[#allocation5 + $0x170] sm:$0xf]
    %v156 = vld [vmem:[#allocation5 + $0x174] sm:$0xf]
    %v157 = vld [vmem:[#allocation5 + $0x178] sm:$0xf]
    %v158 = vld [vmem:[#allocation5 + $0x17c] sm:$0xf]
    %v159 = vld [vmem:[#allocation5 + $0x180] sm:$0xf]
    %v160 = vld [vmem:[#allocation5 + $0x184] sm:$0xf]
    %v161 = vld [vmem:[#allocation5 + $0x188] sm:$0xf]
    %v162 = vld [vmem:[#allocation5 + $0x18c] sm:$0xf]
    %v163 = vld [vmem:[#allocation5 + $0x190] sm:$0xf]
    %v164 = vld [vmem:[#allocation5 + $0x194] sm:$0xf]
    %v165 = vld [vmem:[#allocation5 + $0x198] sm:$0xf]
    %v166 = vld [vmem:[#allocation5 + $0x19c] sm:$0xf]
    %v167 = vld [vmem:[#allocation5 + $0x1a0] sm:$0xf]
    %v168 = vld [vmem:[#allocation5 + $0x1a4] sm:$0xf]
    %v169 = vld [vmem:[#allocation5 + $0x1a8] sm:$0xf]
    %v170 = vld [vmem:[#allocation5 + $0x1ac] sm:$0xf]
    %v171 = vld [vmem:[#allocation5 + $0x1b0] sm:$0xf]
    %v172 = vld [vmem:[#allocation5 + $0x1b4] sm:$0xf]
    %v173 = vld [vmem:[#allocation5 + $0x1b8] sm:$0xf]
    %v174 = vld [vmem:[#allocation5 + $0x1bc] sm:$0xf]
    %v175 = vld [vmem:[#allocation5 + $0x1c0] sm:$0xf]
    %v176 = vld [vmem:[#allocation5 + $0x1c4] sm:$0xf]
    %v177 = vld [vmem:[#allocation5 + $0x1c8] sm:$0xf]
    %v178 = vld [vmem:[#allocation5 + $0x1cc] sm:$0xf]
    %v179 = vld [vmem:[#allocation5 + $0x1d0] sm:$0xf]
    %v180 = vld [vmem:[#allocation5 + $0x1d4] sm:$0xf]
    %v181 = vld [vmem:[#allocation5 + $0x1d8] sm:$0xf]
    %v182 = vld [vmem:[#allocation5 + $0x1dc] sm:$0xf]
    %v183 = vld [vmem:[#allocation5 + $0x1e0] sm:$0xf]
    %v184 = vld [vmem:[#allocation5 + $0x1e4] sm:$0xf]
    %v185 = vld [vmem:[#allocation5 + $0x1e8] sm:$0xf]
    %v186 = vld [vmem:[#allocation5 + $0x1ec] sm:$0xf]
    %v187 = vld [vmem:[#allocation5 + $0x1f0] sm:$0xf]
    %v188 = vld [vmem:[#allocation5 + $0x1f4] sm:$0xf]
    %v189 = vld [vmem:[#allocation5 + $0x1f8] sm:$0xf]
    %v190 = vld [vmem:[#allocation5 + $0x1fc] sm:$0xf]
    %v191 = vlaneseq
    %v192 = vshrl.u32 %v191, 7
    %v193 = vsub.s32 0, %v192
    %v194 = vrot.slane %v58, %v193
    %v199 = vunpack.c.l.b16 %v59
    %v200 = vunpack.c.h.b16 %v59
    %v201 = vunpack.c.l.b16 %v60
    %v202 = vunpack.c.h.b16 %v60
    %v203 = vunpack.c.l.b16 %v61
    %v204 = vunpack.c.h.b16 %v61
    %v205 = vunpack.c.l.b16 %v62
    %v206 = vunpack.c.h.b16 %v62
    %v207 = vpack.c.b16 %v199, %v199
    %v208 = vpack.c.b16 %v200, %v200
    %v209 = vpack.c.b16 %v201, %v201
    %v210 = vpack.c.b16 %v202, %v202
    %v211 = vpack.c.b16 %v203, %v203
    %v212 = vpack.c.b16 %v204, %v204
    %v213 = vpack.c.b16 %v205, %v205
    %v214 = vpack.c.b16 %v206, %v206
    %v351 = vunpack.c.l.b16 %v63
    %v352 = vunpack.c.l.b16 %v64
    %v353 = vunpack.c.l.b16 %v65
    %v354 = vunpack.c.l.b16 %v66
    %v355 = vunpack.c.l.b16 %v67
    %v356 = vunpack.c.l.b16 %v68
    %v357 = vunpack.c.l.b16 %v69
    %v358 = vunpack.c.l.b16 %v70
    %v359 = vunpack.c.l.b16 %v71
    %v360 = vunpack.c.l.b16 %v72
    %v361 = vunpack.c.l.b16 %v73
    %v362 = vunpack.c.l.b16 %v74
    %v363 = vunpack.c.l.b16 %v75
    %v364 = vunpack.c.l.b16 %v76
    %v365 = vunpack.c.l.b16 %v77
    %v366 = vunpack.c.l.b16 %v78
    %v367 = vunpack.c.l.b16 %v79
    %v368 = vunpack.c.l.b16 %v80
    %v369 = vunpack.c.l.b16 %v81
    %v370 = vunpack.c.l.b16 %v82
    %v371 = vunpack.c.l.b16 %v83
    %v372 = vunpack.c.l.b16 %v84
    %v373 = vunpack.c.l.b16 %v85
    %v374 = vunpack.c.l.b16 %v86
    %v375 = vunpack.c.l.b16 %v87
    %v376 = vunpack.c.l.b16 %v88
    %v377 = vunpack.c.l.b16 %v89
    %v378 = vunpack.c.l.b16 %v90
    %v379 = vunpack.c.l.b16 %v91
    %v380 = vunpack.c.l.b16 %v92
    %v381 = vunpack.c.l.b16 %v93
    %v382 = vunpack.c.l.b16 %v94
    %v383 = vunpack.c.l.b16 %v95
    %v384 = vunpack.c.l.b16 %v96
    %v385 = vunpack.c.l.b16 %v97
    %v386 = vunpack.c.l.b16 %v98
    %v387 = vunpack.c.l.b16 %v99
    %v388 = vunpack.c.l.b16 %v100
    %v389 = vunpack.c.l.b16 %v101
    %v390 = vunpack.c.l.b16 %v102
    %v391 = vunpack.c.l.b16 %v103
    %v392 = vunpack.c.l.b16 %v104
    %v393 = vunpack.c.l.b16 %v105
    %v394 = vunpack.c.l.b16 %v106
    %v395 = vunpack.c.l.b16 %v107
    %v396 = vunpack.c.l.b16 %v108
    %v397 = vunpack.c.l.b16 %v109
    %v398 = vunpack.c.l.b16 %v110
    %v399 = vunpack.c.l.b16 %v111
    %v400 = vunpack.c.l.b16 %v112
    %v401 = vunpack.c.l.b16 %v113
    %v402 = vunpack.c.l.b16 %v114
    %v403 = vunpack.c.l.b16 %v115
    %v404 = vunpack.c.l.b16 %v116
    %v405 = vunpack.c.l.b16 %v117
    %v406 = vunpack.c.l.b16 %v118
    %v407 = vunpack.c.l.b16 %v119
    %v408 = vunpack.c.l.b16 %v120
    %v409 = vunpack.c.l.b16 %v121
    %v410 = vunpack.c.l.b16 %v122
    %v411 = vunpack.c.l.b16 %v123
    %v412 = vunpack.c.l.b16 %v124
    %v413 = vunpack.c.l.b16 %v125
    %v414 = vunpack.c.l.b16 %v126
    %v415 = vunpack.c.l.b16 %v127
    %v416 = vunpack.c.l.b16 %v128
    %v417 = vunpack.c.l.b16 %v129
    %v418 = vunpack.c.l.b16 %v130
    %v419 = vunpack.c.l.b16 %v131
    %v420 = vunpack.c.l.b16 %v132
    %v421 = vunpack.c.l.b16 %v133
    %v422 = vunpack.c.l.b16 %v134
    %v423 = vunpack.c.l.b16 %v135
    %v424 = vunpack.c.l.b16 %v136
    %v425 = vunpack.c.l.b16 %v137
    %v426 = vunpack.c.l.b16 %v138
    %v427 = vunpack.c.l.b16 %v139
    %v428 = vunpack.c.l.b16 %v140
    %v429 = vunpack.c.l.b16 %v141
    %v430 = vunpack.c.l.b16 %v142
    %v431 = vunpack.c.l.b16 %v143
    %v432 = vunpack.c.l.b16 %v144
    %v433 = vunpack.c.l.b16 %v145
    %v434 = vunpack.c.l.b16 %v146
    %v435 = vunpack.c.l.b16 %v147
    %v436 = vunpack.c.l.b16 %v148
    %v437 = vunpack.c.l.b16 %v149
    %v438 = vunpack.c.l.b16 %v150
    %v439 = vunpack.c.l.b16 %v151
    %v440 = vunpack.c.l.b16 %v152
    %v441 = vunpack.c.l.b16 %v153
    %v442 = vunpack.c.l.b16 %v154
    %v443 = vunpack.c.l.b16 %v155
    %v444 = vunpack.c.l.b16 %v156
    %v445 = vunpack.c.l.b16 %v157
    %v446 = vunpack.c.l.b16 %v158
    %v447 = vunpack.c.l.b16 %v159
    %v448 = vunpack.c.l.b16 %v160
    %v449 = vunpack.c.l.b16 %v161
    %v450 = vunpack.c.l.b16 %v162
    %v451 = vunpack.c.l.b16 %v163
    %v452 = vunpack.c.l.b16 %v164
    %v453 = vunpack.c.l.b16 %v165
    %v454 = vunpack.c.l.b16 %v166
    %v455 = vunpack.c.l.b16 %v167
    %v456 = vunpack.c.l.b16 %v168
    %v457 = vunpack.c.l.b16 %v169
    %v458 = vunpack.c.l.b16 %v170
    %v459 = vunpack.c.l.b16 %v171
    %v460 = vunpack.c.l.b16 %v172
    %v461 = vunpack.c.l.b16 %v173
    %v462 = vunpack.c.l.b16 %v174
    %v463 = vunpack.c.l.b16 %v175
    %v464 = vunpack.c.l.b16 %v176
    %v465 = vunpack.c.l.b16 %v177
    %v466 = vunpack.c.l.b16 %v178
    %v467 = vunpack.c.l.b16 %v179
    %v468 = vunpack.c.l.b16 %v180
    %v469 = vunpack.c.l.b16 %v181
    %v470 = vunpack.c.l.b16 %v182
    %v471 = vunpack.c.l.b16 %v183
    %v472 = vunpack.c.l.b16 %v184
    %v473 = vunpack.c.l.b16 %v185
    %v474 = vunpack.c.l.b16 %v186
    %v475 = vunpack.c.l.b16 %v187
    %v476 = vunpack.c.l.b16 %v188
    %v477 = vunpack.c.l.b16 %v189
    %v478 = vunpack.c.l.b16 %v190
    %v479 = vpack.c.b16 %v352, %v351
    %v480 = vpack.c.b16 %v354, %v353
    %v481 = vpack.c.b16 %v356, %v355
    %v482 = vpack.c.b16 %v358, %v357
    %v483 = vpack.c.b16 %v360, %v359
    %v484 = vpack.c.b16 %v362, %v361
    %v485 = vpack.c.b16 %v364, %v363
    %v486 = vpack.c.b16 %v366, %v365
    %v487 = vpack.c.b16 %v368, %v367
    %v488 = vpack.c.b16 %v370, %v369
    %v489 = vpack.c.b16 %v372, %v371
    %v490 = vpack.c.b16 %v374, %v373
    %v491 = vpack.c.b16 %v376, %v375
    %v492 = vpack.c.b16 %v378, %v377
    %v493 = vpack.c.b16 %v380, %v379
    %v494 = vpack.c.b16 %v382, %v381
    %v495 = vpack.c.b16 %v384, %v383
    %v496 = vpack.c.b16 %v386, %v385
    %v497 = vpack.c.b16 %v388, %v387
    %v498 = vpack.c.b16 %v390, %v389
    %v499 = vpack.c.b16 %v392, %v391
    %v500 = vpack.c.b16 %v394, %v393
    %v501 = vpack.c.b16 %v396, %v395
    %v502 = vpack.c.b16 %v398, %v397
    %v503 = vpack.c.b16 %v400, %v399
    %v504 = vpack.c.b16 %v402, %v401
    %v505 = vpack.c.b16 %v404, %v403
    %v506 = vpack.c.b16 %v406, %v405
    %v507 = vpack.c.b16 %v408, %v407
    %v508 = vpack.c.b16 %v410, %v409
    %v509 = vpack.c.b16 %v412, %v411
    %v510 = vpack.c.b16 %v414, %v413
    %v511 = vpack.c.b16 %v416, %v415
    %v512 = vpack.c.b16 %v418, %v417
    %v513 = vpack.c.b16 %v420, %v419
    %v514 = vpack.c.b16 %v422, %v421
    %v515 = vpack.c.b16 %v424, %v423
    %v516 = vpack.c.b16 %v426, %v425
    %v517 = vpack.c.b16 %v428, %v427
    %v518 = vpack.c.b16 %v430, %v429
    %v519 = vpack.c.b16 %v432, %v431
    %v520 = vpack.c.b16 %v434, %v433
    %v521 = vpack.c.b16 %v436, %v435
    %v522 = vpack.c.b16 %v438, %v437
    %v523 = vpack.c.b16 %v440, %v439
    %v524 = vpack.c.b16 %v442, %v441
    %v525 = vpack.c.b16 %v444, %v443
    %v526 = vpack.c.b16 %v446, %v445
    %v527 = vpack.c.b16 %v448, %v447
    %v528 = vpack.c.b16 %v450, %v449
    %v529 = vpack.c.b16 %v452, %v451
    %v530 = vpack.c.b16 %v454, %v453
    %v531 = vpack.c.b16 %v456, %v455
    %v532 = vpack.c.b16 %v458, %v457
    %v533 = vpack.c.b16 %v460, %v459
    %v534 = vpack.c.b16 %v462, %v461
    %v535 = vpack.c.b16 %v464, %v463
    %v536 = vpack.c.b16 %v466, %v465
    %v537 = vpack.c.b16 %v468, %v467
    %v538 = vpack.c.b16 %v470, %v469
    %v539 = vpack.c.b16 %v472, %v471
    %v540 = vpack.c.b16 %v474, %v473
    %v541 = vpack.c.b16 %v476, %v475
    %v542 = vpack.c.b16 %v478, %v477
    %607 = vmatprep.subr.bf16.mxu0 0
    %608 = vmatpush1.bf16.msra.mxu0 %v486
    %609 = vmatprep.subr.bf16.mxu0 0
    %610 = vmatpush1.bf16.msra.mxu0 %v485
    %611 = vmatprep.subr.bf16.mxu0 0
    %612 = vmatpush1.bf16.msra.mxu0 %v484
    %613 = vmatprep.subr.bf16.mxu0 0
    %614 = vmatpush1.bf16.msra.mxu0 %v483
    %615 = vmatprep.subr.bf16.mxu0 0
    %616 = vmatpush1.bf16.msra.mxu0 %v482
    %617 = vmatprep.subr.bf16.mxu0 0
    %618 = vmatpush1.bf16.msra.mxu0 %v481
    %619 = vmatprep.subr.bf16.mxu0 0
    %620 = vmatpush1.bf16.msra.mxu0 %v480
    %621 = vmatprep.subr.bf16.mxu0 0
    %622 = vmatpush1.bf16.msra.mxu0 %v479
    %623 = vmatprep.subr.bf16.mxu0 0
    %624 = vmatpush2.bf16.msra.mxu0 %v494
    %625 = vmatprep.subr.bf16.mxu0 0
    %626 = vmatpush2.bf16.msra.mxu0 %v493
    %627 = vmatprep.subr.bf16.mxu0 0
    %628 = vmatpush2.bf16.msra.mxu0 %v492
    %629 = vmatprep.subr.bf16.mxu0 0
    %630 = vmatpush2.bf16.msra.mxu0 %v491
    %631 = vmatprep.subr.bf16.mxu0 0
    %632 = vmatpush2.bf16.msra.mxu0 %v490
    %633 = vmatprep.subr.bf16.mxu0 0
    %634 = vmatpush2.bf16.msra.mxu0 %v489
    %635 = vmatprep.subr.bf16.mxu0 0
    %636 = vmatpush2.bf16.msra.mxu0 %v488
    %637 = vmatprep.subr.bf16.mxu0 0
    %638 = vmatpush2.bf16.msra.mxu0 %v487
    %639 = vmatprep.mubr.bf16.mxu0 %v208
    %640 = vmatmul.mubr.bf16.gmra.mxu0 %v207
    %v641 = vpop.f32.mrf.mxu0
    %v642 = vadd.f32 %v194, %v641
    %v643 = vpop.f32.mrf.mxu0
    %v644 = vpop.f32.mrf.mxu0
    %v645 = vpop.f32.mrf.mxu0
    %646 = vdwg.mxu0
    %647 = vmatprep.subr.bf16.mxu0 0
    %648 = vmatpush1.bf16.msra.mxu0 %v502
    %649 = vmatprep.subr.bf16.mxu0 0
    %650 = vmatpush1.bf16.msra.mxu0 %v501
    %651 = vmatprep.subr.bf16.mxu0 0
    %652 = vmatpush1.bf16.msra.mxu0 %v500
    %653 = vmatprep.subr.bf16.mxu0 0
    %654 = vmatpush1.bf16.msra.mxu0 %v499
    %655 = vmatprep.subr.bf16.mxu0 0
    %656 = vmatpush1.bf16.msra.mxu0 %v498
    %657 = vmatprep.subr.bf16.mxu0 0
    %658 = vmatpush1.bf16.msra.mxu0 %v497
    %659 = vmatprep.subr.bf16.mxu0 0
    %660 = vmatpush1.bf16.msra.mxu0 %v496
    %661 = vmatprep.subr.bf16.mxu0 0
    %662 = vmatpush1.bf16.msra.mxu0 %v495
    %663 = vmatprep.subr.bf16.mxu0 0
    %664 = vmatpush2.bf16.msra.mxu0 %v510
    %665 = vmatprep.subr.bf16.mxu0 0
    %666 = vmatpush2.bf16.msra.mxu0 %v509
    %667 = vmatprep.subr.bf16.mxu0 0
    %668 = vmatpush2.bf16.msra.mxu0 %v508
    %669 = vmatprep.subr.bf16.mxu0 0
    %670 = vmatpush2.bf16.msra.mxu0 %v507
    %671 = vmatprep.subr.bf16.mxu0 0
    %672 = vmatpush2.bf16.msra.mxu0 %v506
    %673 = vmatprep.subr.bf16.mxu0 0
    %674 = vmatpush2.bf16.msra.mxu0 %v505
    %675 = vmatprep.subr.bf16.mxu0 0
    %676 = vmatpush2.bf16.msra.mxu0 %v504
    %677 = vmatprep.subr.bf16.mxu0 0
    %678 = vmatpush2.bf16.msra.mxu0 %v503
    %679 = vmatprep.mubr.bf16.mxu0 %v210
    %680 = vmatmul.mubr.bf16.gmra.mxu0 %v209
    %v681 = vpop.f32.mrf.mxu0
    %v682 = vadd.f32 %v642, %v681
    %v683 = vpop.f32.mrf.mxu0
    %v684 = vpop.f32.mrf.mxu0
    %v685 = vpop.f32.mrf.mxu0
    %686 = vdwg.mxu0
    %687 = vmatprep.subr.bf16.mxu0 0
    %688 = vmatpush1.bf16.msra.mxu0 %v518
    %689 = vmatprep.subr.bf16.mxu0 0
    %690 = vmatpush1.bf16.msra.mxu0 %v517
    %691 = vmatprep.subr.bf16.mxu0 0
    %692 = vmatpush1.bf16.msra.mxu0 %v516
    %693 = vmatprep.subr.bf16.mxu0 0
    %694 = vmatpush1.bf16.msra.mxu0 %v515
    %695 = vmatprep.subr.bf16.mxu0 0
    %696 = vmatpush1.bf16.msra.mxu0 %v514
    %697 = vmatprep.subr.bf16.mxu0 0
    %698 = vmatpush1.bf16.msra.mxu0 %v513
    %699 = vmatprep.subr.bf16.mxu0 0
    %700 = vmatpush1.bf16.msra.mxu0 %v512
    %701 = vmatprep.subr.bf16.mxu0 0
    %702 = vmatpush1.bf16.msra.mxu0 %v511
    %703 = vmatprep.subr.bf16.mxu0 0
    %704 = vmatpush2.bf16.msra.mxu0 %v526
    %705 = vmatprep.subr.bf16.mxu0 0
    %706 = vmatpush2.bf16.msra.mxu0 %v525
    %707 = vmatprep.subr.bf16.mxu0 0
    %708 = vmatpush2.bf16.msra.mxu0 %v524
    %709 = vmatprep.subr.bf16.mxu0 0
    %710 = vmatpush2.bf16.msra.mxu0 %v523
    %711 = vmatprep.subr.bf16.mxu0 0
    %712 = vmatpush2.bf16.msra.mxu0 %v522
    %713 = vmatprep.subr.bf16.mxu0 0
    %714 = vmatpush2.bf16.msra.mxu0 %v521
    %715 = vmatprep.subr.bf16.mxu0 0
    %716 = vmatpush2.bf16.msra.mxu0 %v520
    %717 = vmatprep.subr.bf16.mxu0 0
    %718 = vmatpush2.bf16.msra.mxu0 %v519
    %719 = vmatprep.mubr.bf16.mxu0 %v212
    %720 = vmatmul.mubr.bf16.gmra.mxu0 %v211
    %v721 = vpop.f32.mrf.mxu0
    %v722 = vadd.f32 %v682, %v721
    %v723 = vpop.f32.mrf.mxu0
    %v724 = vpop.f32.mrf.mxu0
    %v725 = vpop.f32.mrf.mxu0
    %726 = vdwg.mxu0
    %727 = vmatprep.subr.bf16.mxu0 0
    %728 = vmatpush1.bf16.msra.mxu0 %v534
    %729 = vmatprep.subr.bf16.mxu0 0
    %730 = vmatpush1.bf16.msra.mxu0 %v533
    %731 = vmatprep.subr.bf16.mxu0 0
    %732 = vmatpush1.bf16.msra.mxu0 %v532
    %733 = vmatprep.subr.bf16.mxu0 0
    %734 = vmatpush1.bf16.msra.mxu0 %v531
    %735 = vmatprep.subr.bf16.mxu0 0
    %736 = vmatpush1.bf16.msra.mxu0 %v530
    %737 = vmatprep.subr.bf16.mxu0 0
    %738 = vmatpush1.bf16.msra.mxu0 %v529
    %739 = vmatprep.subr.bf16.mxu0 0
    %740 = vmatpush1.bf16.msra.mxu0 %v528
    %741 = vmatprep.subr.bf16.mxu0 0
    %742 = vmatpush1.bf16.msra.mxu0 %v527
    %743 = vmatprep.subr.bf16.mxu0 0
    %744 = vmatpush2.bf16.msra.mxu0 %v542
    %745 = vmatprep.subr.bf16.mxu0 0
    %746 = vmatpush2.bf16.msra.mxu0 %v541
    %747 = vmatprep.subr.bf16.mxu0 0
    %748 = vmatpush2.bf16.msra.mxu0 %v540
    %749 = vmatprep.subr.bf16.mxu0 0
    %750 = vmatpush2.bf16.msra.mxu0 %v539
    %751 = vmatprep.subr.bf16.mxu0 0
    %752 = vmatpush2.bf16.msra.mxu0 %v538
    %753 = vmatprep.subr.bf16.mxu0 0
    %754 = vmatpush2.bf16.msra.mxu0 %v537
    %755 = vmatprep.subr.bf16.mxu0 0
    %756 = vmatpush2.bf16.msra.mxu0 %v536
    %757 = vmatprep.subr.bf16.mxu0 0
    %758 = vmatpush2.bf16.msra.mxu0 %v535
    %759 = vmatprep.mubr.bf16.mxu0 %v214
    %760 = vmatmul.mubr.bf16.gmra.mxu0 %v213
    %v761 = vpop.f32.mrf.mxu0
    %v762 = vadd.f32 %v722, %v761
    %v763 = vpop.f32.mrf.mxu0
    %v764 = vpop.f32.mrf.mxu0
    %v765 = vpop.f32.mrf.mxu0
    %766 = vdwg.mxu0
    %vm767 = vcmp.gt.f32.partialorder %v762, 0.0
    %v768 = vmul.f32 %v762, 0.01
    %v769 = vsel %vm767, %v762, %v768
    %v770 = vld [vmem:[#allocation7] sm:$0xff]
    %v771 = vld [vmem:[#allocation7 + $0x8] sm:$0xff]
    %v772 = vld [vmem:[#allocation7 + $0x10] sm:$0xff]
    %v773 = vld [vmem:[#allocation7 + $0x18] sm:$0xff]
    %v774 = vld [vmem:[#allocation7 + $0x20] sm:$0xff]
    %v775 = vld [vmem:[#allocation7 + $0x28] sm:$0xff]
    %v776 = vld [vmem:[#allocation7 + $0x30] sm:$0xff]
    %v777 = vld [vmem:[#allocation7 + $0x38] sm:$0xff]
    %v778 = vld [vmem:[#allocation7 + $0x40] sm:$0xff]
    %v779 = vld [vmem:[#allocation7 + $0x48] sm:$0xff]
    %v780 = vld [vmem:[#allocation7 + $0x50] sm:$0xff]
    %v781 = vld [vmem:[#allocation7 + $0x58] sm:$0xff]
    %v782 = vld [vmem:[#allocation7 + $0x60] sm:$0xff]
    %v783 = vld [vmem:[#allocation7 + $0x68] sm:$0xff]
    %v784 = vld [vmem:[#allocation7 + $0x70] sm:$0xff]
    %v785 = vld [vmem:[#allocation7 + $0x78] sm:$0xff]
    %v786 = vlaneseq
    %v787 = vshrl.u32 %v786, 7
    %v788 = vsub.s32 1, %v787
    %v789 = vrot.slane %v58, %v788
    %790 = vmatprep.subr.mxu0 0.0
    %791 = vmatpush1.msra.mxu0 %v785
    %792 = vmatprep.subr.mxu0 0.0
    %793 = vmatpush1.msra.mxu0 %v784
    %794 = vmatprep.subr.mxu0 0.0
    %795 = vmatpush1.msra.mxu0 %v783
    %796 = vmatprep.subr.mxu0 0.0
    %797 = vmatpush1.msra.mxu0 %v782
    %798 = vmatprep.subr.mxu0 0.0
    %799 = vmatpush1.msra.mxu0 %v781
    %800 = vmatprep.subr.mxu0 0.0
    %801 = vmatpush1.msra.mxu0 %v780
    %802 = vmatprep.subr.mxu0 0.0
    %803 = vmatpush1.msra.mxu0 %v779
    %804 = vmatprep.subr.mxu0 0.0
    %805 = vmatpush1.msra.mxu0 %v778
    %806 = vmatprep.subr.mxu0 0.0
    %807 = vmatpush1.msra.mxu0 %v777
    %808 = vmatprep.subr.mxu0 0.0
    %809 = vmatpush1.msra.mxu0 %v776
    %810 = vmatprep.subr.mxu0 0.0
    %811 = vmatpush1.msra.mxu0 %v775
    %812 = vmatprep.subr.mxu0 0.0
    %813 = vmatpush1.msra.mxu0 %v774
    %814 = vmatprep.subr.mxu0 0.0
    %815 = vmatpush1.msra.mxu0 %v773
    %816 = vmatprep.subr.mxu0 0.0
    %817 = vmatpush1.msra.mxu0 %v772
    %818 = vmatprep.subr.mxu0 0.0
    %819 = vmatpush1.msra.mxu0 %v771
    %820 = vmatprep.subr.mxu0 0.0
    %821 = vmatpush1.msra.mxu0 %v770
    %822 = vmatprep.subr.mxu0 0.0
    %823 = vmatpush2.msra.mxu0 0.0
    %824 = vmatprep.subr.mxu0 0.0
    %825 = vmatpush2.msra.mxu0 0.0
    %826 = vmatprep.subr.mxu0 0.0
    %827 = vmatpush2.msra.mxu0 0.0
    %828 = vmatprep.subr.mxu0 0.0
    %829 = vmatpush2.msra.mxu0 0.0
    %830 = vmatprep.subr.mxu0 0.0
    %831 = vmatpush2.msra.mxu0 0.0
    %832 = vmatprep.subr.mxu0 0.0
    %833 = vmatpush2.msra.mxu0 0.0
    %834 = vmatprep.subr.mxu0 0.0
    %835 = vmatpush2.msra.mxu0 0.0
    %836 = vmatprep.subr.mxu0 0.0
    %837 = vmatpush2.msra.mxu0 0.0
    %838 = vmatprep.subr.mxu0 0.0
    %839 = vmatpush2.msra.mxu0 0.0
    %840 = vmatprep.subr.mxu0 0.0
    %841 = vmatpush2.msra.mxu0 0.0
    %842 = vmatprep.subr.mxu0 0.0
    %843 = vmatpush2.msra.mxu0 0.0
    %844 = vmatprep.subr.mxu0 0.0
    %845 = vmatpush2.msra.mxu0 0.0
    %846 = vmatprep.subr.mxu0 0.0
    %847 = vmatpush2.msra.mxu0 0.0
    %848 = vmatprep.subr.mxu0 0.0
    %849 = vmatpush2.msra.mxu0 0.0
    %850 = vmatprep.subr.mxu0 0.0
    %851 = vmatpush2.msra.mxu0 0.0
    %852 = vmatprep.subr.mxu0 0.0
    %853 = vmatpush2.msra.mxu0 0.0
    %854 = vmatprep.mubr.f32.mxu0 0.0
    %855 = vmatmul.mubr.f32.gmra.mxu0 %v769
    %v856 = vpop.f32.mrf.mxu0
    %v857 = vadd.f32 %v789, %v856
    %v858 = vpop.f32.mrf.mxu0
    %859 = vdwg.mxu0
    %860 = vst [vmem:[#allocation8] sm:$0xff] %v857
    // Predicated region
    $region30: #{tpu_custom_call.1} parent=1 // pred_check
      _
    $region31: #{tpu_custom_call.1} parent=1 // pred_check_branch
      %862 = sbr.rel (0) target = $region33
    $region32: #{tpu_custom_call.1} parent=1 // pred_region
      %s864 = ssub.s32 128, 128
      %865 = vsyncadd [#allocation4], %s864
      %s867 = sshll.u32 [#allocation8], 4
      %s868 = int_to_ptr.vmem [resolvable:$true] %s867
      %870 = dma.vmem_to_hbm [thread:$0]  %s868, 128, %s4, [#allocation4]
    $region33: #{tpu_custom_call.1} parent=1 // pred_fallthru
      _
    // Predicated region
    $region34: #{tpu_custom_call.1} parent=1 // pred_check
      _
    $region35: #{tpu_custom_call.1} parent=1 // pred_check_branch
      %872 = sbr.rel (0) target = $region37
    $region36: #{tpu_custom_call.1} parent=1 // pred_region
      %873 = dma.done [#allocation4], 128
    $region37: #{tpu_custom_call.1} parent=1 // pred_fallthru
      _
    %874 = vsyncpa [#allocation3], 1
    %875 = vsyncpa [#allocation6], 1
    %876 = vsyncpa [#allocation4], 1

</llo_original>
